<compile_context>
chip_gen: v7x
topology: tpu7x:2x2x1
jax: 0.10.0
libtpu: 0.0.40
codegen_flags: <defaults>
</compile_context>

<pallas_src>
import math

import jax
import jax.numpy as jnp
from jax.experimental import pallas as pl
from jax.experimental.pallas import tpu as pltpu

# ---- config (mirrors C.* of the PyTorch module, at small sizes) -------------
HIDDEN_SIZE = 32
FF_SIZE = 64
MULTI_HEAD = 4
HIDDEN_SIZE_HEAD = HIDDEN_SIZE // MULTI_HEAD  # 8
LN_EPS = 1e-6

B = 2   # batch
S = 8   # sequence length


def sa_kernel(x_ref, mask_ref,
              wqkv_ref, bqkv_ref, wm_ref, bm_ref,
              w1_ref, b1_ref, w2_ref, b2_ref,
              g1_ref, be1_ref, g2_ref, be2_ref,
              out_ref):
    bb, Sn, H = x_ref.shape          # batch-block, seq, hidden (all static)
    dh = H // MULTI_HEAD
    rows = bb * Sn

    # Leading-dim merge (bb, Sn, H) -> (bb*Sn, H): layout-free reshape.
    xf = x_ref[...].reshape(rows, H)                  # [rows, H] f32
    mask = mask_ref[...]                              # [bb, Sn] f32 (1.0 == masked)
    masked = (mask > 0.5)[:, None, :]                 # [bb, 1, Sn] hoisted predicate

    # --- fused QKV projection: one MXU matmul for q, k and v ----------------
    qkv = jnp.dot(xf, wqkv_ref[...],
                  preferred_element_type=jnp.float32) + bqkv_ref[...]   # [rows, 3H]
    q3 = qkv[:, 0 * H:1 * H].reshape(bb, Sn, H)
    k3 = qkv[:, 1 * H:2 * H].reshape(bb, Sn, H)
    v3 = qkv[:, 2 * H:3 * H].reshape(bb, Sn, H)

    scale = 1.0 / math.sqrt(dh)
    wm = wm_ref[...]                                  # [H, H] merge weight

    # --- multi-head attention ------------------------------------------------
    # Small static head loop (MULTI_HEAD=4); each head does batched 3-D
    # einsums over all bb sequences at once (no explicit .T).  linear_merge is
    # folded into the loop: att += head_out @ Wm[rows_of_this_head, :], which
    # is mathematically identical to concat(heads) @ Wm but avoids the
    # lane-axis concatenate.
    att = jnp.zeros((rows, H), jnp.float32)
    for h in range(MULTI_HEAD):
        lo = h * dh
        hi = lo + dh
        qh = q3[..., lo:hi]                           # [bb, Sn, dh]
        kh = k3[..., lo:hi]
        vh = v3[..., lo:hi]
        sc = jnp.einsum('bqd,bkd->bqk', qh, kh,
                        preferred_element_type=jnp.float32) * scale     # [bb, Sn, Sn]
        sc = jnp.where(masked, -1e9, sc)
        sc = sc - jnp.max(sc, axis=-1, keepdims=True)
        p = jnp.exp(sc)
        p = p * pl.reciprocal(jnp.sum(p, axis=-1, keepdims=True), approx=False)
        oh = jnp.einsum('bqk,bkd->bqd', p, vh,
                        preferred_element_type=jnp.float32)             # [bb, Sn, dh]
        att = att + jnp.dot(oh.reshape(rows, dh), wm[lo:hi, :],
                            preferred_element_type=jnp.float32)
    att = att + bm_ref[...]                           # linear_merge bias

    # --- residual + LayerNorm (PyTorch-style: unbiased std, std + eps) ------
    def layer_norm(y, g_ref, b_ref):
        mean = jnp.mean(y, axis=-1, keepdims=True)
        d = y - mean
        var_unbiased = jnp.sum(d * d, axis=-1, keepdims=True) / (H - 1)
        std = jnp.sqrt(var_unbiased)
        return g_ref[...] * d / (std + LN_EPS) + b_ref[...]

    y1 = layer_norm(xf + att, g1_ref, be1_ref)        # [rows, H]

    # --- FFN -----------------------------------------------------------------
    h1 = jnp.maximum(
        jnp.dot(y1, w1_ref[...], preferred_element_type=jnp.float32) + b1_ref[...],
        0.0)                                          # [rows, FF]
    ffn = jnp.dot(h1, w2_ref[...], preferred_element_type=jnp.float32) + b2_ref[...]

    y2 = layer_norm(y1 + ffn, g2_ref, be2_ref)        # [rows, H]

    # --- lane-dense store: each sequence's [Sn, H] rows flattened into one
    # [Sn*H] (=256-lane) output row via static row slices + lane concat.
    out_rows = []
    for b in range(bb):
        seq = y2[b * Sn:(b + 1) * Sn, :]              # [Sn, H]
        out_rows.append(jnp.concatenate(
            [seq[s:s + 1, :] for s in range(Sn)], axis=-1))  # [1, Sn*H]
    out_ref[...] = jnp.concatenate(out_rows, axis=0)  # [bb, Sn*H]


def sa_forward(x, x_mask, params, batch_block=None):
    """x: [B, S, H] f32.  x_mask: [B, 1, 1, S] bool (True == masked key)."""
    Bn, Sn, Hn = x.shape
    if batch_block is None:
        # Single-TensorCore chips (v5e/v6e): collapse the whole batch into one
        # grid step (avoids ~0.35us per-step pipeline overhead for near-zero
        # work and doubles the matmul M dimension).  On dual-core v7x, pass
        # batch_block=Bn//2 to keep a size-2 "parallel" grid axis.
        batch_block = Bn
    assert Bn % batch_block == 0
    n_steps = Bn // batch_block

    mask_f = x_mask.reshape(Bn, Sn).astype(jnp.float32)   # 1.0 == masked key

    weight_args = [
        params["wqkv_t"], params["bqkv"], params["wm_t"], params["bm"],
        params["w1_t"], params["b1"], params["w2_t"], params["b2"],
        params["g1"], params["be1"], params["g2"], params["be2"],
    ]

    def full_spec(arr):
        return pl.BlockSpec(arr.shape, lambda b, _nd=arr.ndim: (0,) * _nd)

    in_specs = [
        pl.BlockSpec((batch_block, Sn, Hn), lambda b: (b, 0, 0)),   # x
        pl.BlockSpec((batch_block, Sn), lambda b: (b, 0)),          # mask
    ] + [full_spec(w) for w in weight_args]

    out_spec = pl.BlockSpec((batch_block, Sn * Hn), lambda b: (b, 0))

    out_flat = pl.pallas_call(
        sa_kernel,
        out_shape=jax.ShapeDtypeStruct((Bn, Sn * Hn), jnp.float32),
        grid_spec=pltpu.PrefetchScalarGridSpec(
            num_scalar_prefetch=0,
            grid=(n_steps,),
            in_specs=in_specs,
            out_specs=out_spec,
        ),
        compiler_params=pltpu.CompilerParams(
            dimension_semantics=("parallel",)),
    )(x, mask_f, *weight_args)

    return out_flat.reshape(Bn, Sn, Hn)


def init_params(key):
    """Deterministic parameter init.  PyTorch Linear weights are [out, in];
    we store them pre-transposed ([in, out]) and with Q/K/V fused to [H, 3H]."""
    ks = jax.random.split(key, 12)
    scale = 0.05

    def lin(kw, kb, n_in, n_out):
        w = scale * jax.random.normal(kw, (n_out, n_in), jnp.float32)  # torch layout
        b = scale * jax.random.normal(kb, (n_out,), jnp.float32)
        return w.T, b.reshape(1, n_out)

    wq_t, bq = lin(ks[0], ks[1], HIDDEN_SIZE, HIDDEN_SIZE)
    wk_t, bk = lin(ks[2], ks[3], HIDDEN_SIZE, HIDDEN_SIZE)
    wv_t, bv = lin(ks[4], ks[5], HIDDEN_SIZE, HIDDEN_SIZE)
    wm_t, bm = lin(ks[6], ks[7], HIDDEN_SIZE, HIDDEN_SIZE)
    w1_t, b1 = lin(ks[8], ks[9], HIDDEN_SIZE, FF_SIZE)
    w2_t, b2 = lin(ks[10], ks[11], FF_SIZE, HIDDEN_SIZE)

    return dict(
        wqkv_t=jnp.concatenate([wq_t, wk_t, wv_t], axis=1),   # [H, 3H]
        bqkv=jnp.concatenate([bq, bk, bv], axis=1),            # [1, 3H]
        wm_t=wm_t, bm=bm,
        w1_t=w1_t, b1=b1, w2_t=w2_t, b2=b2,
        g1=jnp.ones((1, HIDDEN_SIZE), jnp.float32),
        be1=jnp.zeros((1, HIDDEN_SIZE), jnp.float32),
        g2=jnp.ones((1, HIDDEN_SIZE), jnp.float32),
        be2=jnp.zeros((1, HIDDEN_SIZE), jnp.float32),
    )


def sa_reference(x, x_mask, p):
    """Pure-JAX reference reproducing the PyTorch forward (dropout = identity)."""
    Bn, Sn, H = x.shape
    wq_t, wk_t, wv_t = (p["wqkv_t"][:, 0:H], p["wqkv_t"][:, H:2 * H],
                        p["wqkv_t"][:, 2 * H:3 * H])
    bq, bk, bv = (p["bqkv"][:, 0:H], p["bqkv"][:, H:2 * H], p["bqkv"][:, 2 * H:3 * H])

    def lin(z, wt, b):
        return z @ wt + b

    def split_heads(z):
        return z.reshape(Bn, Sn, MULTI_HEAD, HIDDEN_SIZE_HEAD).transpose(0, 2, 1, 3)

    q = split_heads(lin(x, wq_t, bq))
    k = split_heads(lin(x, wk_t, bk))
    v = split_heads(lin(x, wv_t, bv))
    sc = jnp.einsum("bhqd,bhkd->bhqk", q, k) / math.sqrt(HIDDEN_SIZE_HEAD)
    sc = jnp.where(x_mask, -1e9, sc)
    p_att = jax.nn.softmax(sc, axis=-1)
    att = jnp.einsum("bhqk,bhkd->bhqd", p_att, v).transpose(0, 2, 1, 3).reshape(Bn, Sn, H)
    att = lin(att, p["wm_t"], p["bm"])

    def ln(y, g, b):
        mean = y.mean(-1, keepdims=True)
        d = y - mean
        std = jnp.sqrt((d * d).sum(-1, keepdims=True) / (H - 1))
        return g * d / (std + LN_EPS) + b

    y1 = ln(x + att, p["g1"], p["be1"])
    ffn = lin(jnp.maximum(lin(y1, p["w1_t"], p["b1"]), 0.0), p["w2_t"], p["b2"])
    return ln(y1 + ffn, p["g2"], p["be2"])


if __name__ == "__main__":
    key = jax.random.PRNGKey(0)
    kx, kp = jax.random.split(key)

    x = jax.random.normal(kx, (B, S, HIDDEN_SIZE), jnp.float32)
    # mask: PyTorch-style [B, 1, 1, S] boolean; mask out the last 2 keys of batch 1.
    key_mask = jnp.zeros((B, S), dtype=bool).at[1, -2:].set(True)
    x_mask = key_mask[:, None, None, :]

    params = init_params(kp)

    out = sa_forward(x, x_mask, params)
    out = jax.block_until_ready(out)

    ref = sa_reference(x, x_mask, params)
    assert out.shape == (B, S, HIDDEN_SIZE)
    assert jnp.allclose(out, ref, atol=1e-4, rtol=1e-4), (
        float(jnp.max(jnp.abs(out - ref))))

    print("KERNEL_OK")
</pallas_src>

<mosaic_0001>
module attributes {stable_mosaic.version = 11 : i64} {
  func.func @sa_kernel(%arg0: i32, %arg1: memref<2x8x32xf32, #tpu.memory_space<vmem>>, %arg2: memref<2x8xf32, #tpu.memory_space<vmem>>, %arg3: memref<32x96xf32, #tpu.memory_space<vmem>>, %arg4: memref<1x96xf32, #tpu.memory_space<vmem>>, %arg5: memref<32x32xf32, #tpu.memory_space<vmem>>, %arg6: memref<1x32xf32, #tpu.memory_space<vmem>>, %arg7: memref<32x64xf32, #tpu.memory_space<vmem>>, %arg8: memref<1x64xf32, #tpu.memory_space<vmem>>, %arg9: memref<64x32xf32, #tpu.memory_space<vmem>>, %arg10: memref<1x32xf32, #tpu.memory_space<vmem>>, %arg11: memref<1x32xf32, #tpu.memory_space<vmem>>, %arg12: memref<1x32xf32, #tpu.memory_space<vmem>>, %arg13: memref<1x32xf32, #tpu.memory_space<vmem>>, %arg14: memref<1x32xf32, #tpu.memory_space<vmem>>, %arg15: memref<2x256xf32, #tpu.memory_space<vmem>>) attributes {dimension_semantics = [#tpu.dimension_semantics<parallel>], iteration_bounds = array<i64: 1>, scalar_prefetch = 0 : i64, scratch_operands = 0 : i64, tpu.core_type = #tpu.core_type<tc>, window_params = [{transform_indices = @transform_0, window_bounds = array<i64: 2, 8, 32>}, {transform_indices = @transform_1, window_bounds = array<i64: 2, 8>}, {pipeline_mode = #tpu.pipeline_mode<synchronous>, transform_indices = @transform_2, window_bounds = array<i64: 32, 96>}, {pipeline_mode = #tpu.pipeline_mode<synchronous>, transform_indices = @transform_3, window_bounds = array<i64: 1, 96>}, {pipeline_mode = #tpu.pipeline_mode<synchronous>, transform_indices = @transform_4, window_bounds = array<i64: 32, 32>}, {pipeline_mode = #tpu.pipeline_mode<synchronous>, transform_indices = @transform_5, window_bounds = array<i64: 1, 32>}, {pipeline_mode = #tpu.pipeline_mode<synchronous>, transform_indices = @transform_6, window_bounds = array<i64: 32, 64>}, {pipeline_mode = #tpu.pipeline_mode<synchronous>, transform_indices = @transform_7, window_bounds = array<i64: 1, 64>}, {pipeline_mode = #tpu.pipeline_mode<synchronous>, transform_indices = @transform_8, window_bounds = array<i64: 64, 32>}, {pipeline_mode = #tpu.pipeline_mode<synchronous>, transform_indices = @transform_9, window_bounds = array<i64: 1, 32>}, {pipeline_mode = #tpu.pipeline_mode<synchronous>, transform_indices = @transform_10, window_bounds = array<i64: 1, 32>}, {pipeline_mode = #tpu.pipeline_mode<synchronous>, transform_indices = @transform_11, window_bounds = array<i64: 1, 32>}, {pipeline_mode = #tpu.pipeline_mode<synchronous>, transform_indices = @transform_12, window_bounds = array<i64: 1, 32>}, {pipeline_mode = #tpu.pipeline_mode<synchronous>, transform_indices = @transform_13, window_bounds = array<i64: 1, 32>}, {transform_indices = @transform_14, window_bounds = array<i64: 2, 256>}]} {
    %c0 = arith.constant 0 : index
    %c0_0 = arith.constant 0 : index
    %c0_1 = arith.constant 0 : index
    %0 = vector.load %arg1[%c0, %c0_0, %c0_1] : memref<2x8x32xf32, #tpu.memory_space<vmem>>, vector<2x8x32xf32>
    %1 = vector.shape_cast %0 : vector<2x8x32xf32> to vector<16x32xf32>
    %c0_2 = arith.constant 0 : index
    %c0_3 = arith.constant 0 : index
    %2 = vector.load %arg2[%c0_2, %c0_3] : memref<2x8xf32, #tpu.memory_space<vmem>>, vector<2x8xf32>
    %cst = arith.constant 5.000000e-01 : f32
    %3 = vector.broadcast %cst : f32 to vector<2x8xf32>
    %4 = arith.cmpf ogt, %2, %3 : vector<2x8xf32>
    %5 = vector.shape_cast %4 : vector<2x8xi1> to vector<2x1x8xi1>
    %c0_4 = arith.constant 0 : index
    %c0_5 = arith.constant 0 : index
    %6 = vector.load %arg3[%c0_4, %c0_5] : memref<32x96xf32, #tpu.memory_space<vmem>>, vector<32x96xf32>
    %cst_6 = arith.constant dense<0.000000e+00> : vector<16x96xf32>
    %7 = tpu.matmul %1, %6, %cst_6 {dimension_numbers = #tpu.dot_dimension_numbers<[1], [0], [0], [1], [0, 0, 1, 1], [], []>} : vector<16x32xf32>, vector<32x96xf32>, vector<16x96xf32> -> vector<16x96xf32>
    %c0_7 = arith.constant 0 : index
    %c0_8 = arith.constant 0 : index
    %8 = vector.load %arg4[%c0_7, %c0_8] : memref<1x96xf32, #tpu.memory_space<vmem>>, vector<1x96xf32>
    %9 = vector.broadcast %8 : vector<1x96xf32> to vector<16x96xf32>
    %10 = arith.addf %7, %9 : vector<16x96xf32>
    %11 = vector.extract_strided_slice %10 {offsets = [0, 0], sizes = [16, 32], strides = [1, 1]} : vector<16x96xf32> to vector<16x32xf32>
    %12 = vector.shape_cast %11 : vector<16x32xf32> to vector<2x8x32xf32>
    %13 = vector.extract_strided_slice %10 {offsets = [0, 32], sizes = [16, 32], strides = [1, 1]} : vector<16x96xf32> to vector<16x32xf32>
    %14 = vector.shape_cast %13 : vector<16x32xf32> to vector<2x8x32xf32>
    %15 = vector.extract_strided_slice %10 {offsets = [0, 64], sizes = [16, 32], strides = [1, 1]} : vector<16x96xf32> to vector<16x32xf32>
    %16 = vector.shape_cast %15 : vector<16x32xf32> to vector<2x8x32xf32>
    %c0_9 = arith.constant 0 : index
    %c0_10 = arith.constant 0 : index
    %17 = vector.load %arg5[%c0_9, %c0_10] : memref<32x32xf32, #tpu.memory_space<vmem>>, vector<32x32xf32>
    %cst_11 = arith.constant 0.000000e+00 : f32
    %18 = vector.broadcast %cst_11 : f32 to vector<16x32xf32>
    %19 = vector.extract_strided_slice %12 {offsets = [0, 0, 0], sizes = [2, 8, 8], strides = [1, 1, 1]} : vector<2x8x32xf32> to vector<2x8x8xf32>
    %20 = vector.extract_strided_slice %14 {offsets = [0, 0, 0], sizes = [2, 8, 8], strides = [1, 1, 1]} : vector<2x8x32xf32> to vector<2x8x8xf32>
    %21 = vector.extract_strided_slice %16 {offsets = [0, 0, 0], sizes = [2, 8, 8], strides = [1, 1, 1]} : vector<2x8x32xf32> to vector<2x8x8xf32>
    "tpu.trace_start"() <{level = 10 : i32, message = "bqd,bkd->bqk"}> : () -> ()
    %cst_12 = arith.constant dense<0.000000e+00> : vector<2x8x8xf32>
    %22 = tpu.matmul %19, %20, %cst_12 {dimension_numbers = #tpu.dot_dimension_numbers<[2], [2], [1], [1], [0, 0, 0, 1, 1, 1], [0], [0]>} : vector<2x8x8xf32>, vector<2x8x8xf32>, vector<2x8x8xf32> -> vector<2x8x8xf32>
    "tpu.trace_stop"() : () -> ()
    %cst_13 = arith.constant 0.353553385 : f32
    %23 = vector.broadcast %cst_13 : f32 to vector<2x8x8xf32>
    %24 = arith.mulf %22, %23 : vector<2x8x8xf32>
    %cst_14 = arith.constant -1.000000e+09 : f32
    %25 = vector.shape_cast %5 : vector<2x1x8xi1> to vector<2x1x8xi1>
    %26 = vector.broadcast %25 : vector<2x1x8xi1> to vector<2x8x8xi1>
    %27 = vector.broadcast %cst_14 : f32 to vector<2x8x8xf32>
    %28 = arith.select %26, %27, %24 : vector<2x8x8xi1>, vector<2x8x8xf32>
    %cst_15 = arith.constant dense<0xFF800000> : vector<2x8xf32>
    %29 = vector.multi_reduction <maximumf>, %28, %cst_15 [2] : vector<2x8x8xf32> to vector<2x8xf32>
    %30 = vector.shape_cast %29 : vector<2x8xf32> to vector<2x8x1xf32>
    %31 = vector.broadcast %30 : vector<2x8x1xf32> to vector<2x8x8xf32>
    %32 = arith.subf %28, %31 : vector<2x8x8xf32>
    %33 = math.exp %32 : vector<2x8x8xf32>
    %cst_16 = arith.constant dense<0.000000e+00> : vector<2x8xf32>
    %34 = vector.multi_reduction <add>, %33, %cst_16 [2] : vector<2x8x8xf32> to vector<2x8xf32>
    %35 = vector.shape_cast %34 : vector<2x8xf32> to vector<2x8x1xf32>
    %36 = tpu.reciprocal %35 : vector<2x8x1xf32> -> vector<2x8x1xf32>
    %37 = vector.broadcast %36 : vector<2x8x1xf32> to vector<2x8x8xf32>
    %38 = arith.mulf %33, %37 : vector<2x8x8xf32>
    "tpu.trace_start"() <{level = 10 : i32, message = "bqk,bkd->bqd"}> : () -> ()
    %cst_17 = arith.constant dense<0.000000e+00> : vector<2x8x8xf32>
    %39 = tpu.matmul %38, %21, %cst_17 {dimension_numbers = #tpu.dot_dimension_numbers<[2], [1], [1], [2], [0, 0, 0, 1, 1, 2], [0], [0]>} : vector<2x8x8xf32>, vector<2x8x8xf32>, vector<2x8x8xf32> -> vector<2x8x8xf32>
    "tpu.trace_stop"() : () -> ()
    %40 = vector.shape_cast %39 : vector<2x8x8xf32> to vector<16x8xf32>
    %41 = vector.extract_strided_slice %17 {offsets = [0, 0], sizes = [8, 32], strides = [1, 1]} : vector<32x32xf32> to vector<8x32xf32>
    %cst_18 = arith.constant dense<0.000000e+00> : vector<16x32xf32>
    %42 = tpu.matmul %40, %41, %cst_18 {dimension_numbers = #tpu.dot_dimension_numbers<[1], [0], [0], [1], [0, 0, 1, 1], [], []>} : vector<16x8xf32>, vector<8x32xf32>, vector<16x32xf32> -> vector<16x32xf32>
    %43 = arith.addf %18, %42 : vector<16x32xf32>
    %44 = vector.extract_strided_slice %12 {offsets = [0, 0, 8], sizes = [2, 8, 8], strides = [1, 1, 1]} : vector<2x8x32xf32> to vector<2x8x8xf32>
    %45 = vector.extract_strided_slice %14 {offsets = [0, 0, 8], sizes = [2, 8, 8], strides = [1, 1, 1]} : vector<2x8x32xf32> to vector<2x8x8xf32>
    %46 = vector.extract_strided_slice %16 {offsets = [0, 0, 8], sizes = [2, 8, 8], strides = [1, 1, 1]} : vector<2x8x32xf32> to vector<2x8x8xf32>
    "tpu.trace_start"() <{level = 10 : i32, message = "bqd,bkd->bqk"}> : () -> ()
    %cst_19 = arith.constant dense<0.000000e+00> : vector<2x8x8xf32>
    %47 = tpu.matmul %44, %45, %cst_19 {dimension_numbers = #tpu.dot_dimension_numbers<[2], [2], [1], [1], [0, 0, 0, 1, 1, 1], [0], [0]>} : vector<2x8x8xf32>, vector<2x8x8xf32>, vector<2x8x8xf32> -> vector<2x8x8xf32>
    "tpu.trace_stop"() : () -> ()
    %cst_20 = arith.constant 0.353553385 : f32
    %48 = vector.broadcast %cst_20 : f32 to vector<2x8x8xf32>
    %49 = arith.mulf %47, %48 : vector<2x8x8xf32>
    %cst_21 = arith.constant -1.000000e+09 : f32
    %50 = vector.shape_cast %5 : vector<2x1x8xi1> to vector<2x1x8xi1>
    %51 = vector.broadcast %50 : vector<2x1x8xi1> to vector<2x8x8xi1>
    %52 = vector.broadcast %cst_21 : f32 to vector<2x8x8xf32>
    %53 = arith.select %51, %52, %49 : vector<2x8x8xi1>, vector<2x8x8xf32>
    %cst_22 = arith.constant dense<0xFF800000> : vector<2x8xf32>
    %54 = vector.multi_reduction <maximumf>, %53, %cst_22 [2] : vector<2x8x8xf32> to vector<2x8xf32>
    %55 = vector.shape_cast %54 : vector<2x8xf32> to vector<2x8x1xf32>
    %56 = vector.broadcast %55 : vector<2x8x1xf32> to vector<2x8x8xf32>
    %57 = arith.subf %53, %56 : vector<2x8x8xf32>
    %58 = math.exp %57 : vector<2x8x8xf32>
    %cst_23 = arith.constant dense<0.000000e+00> : vector<2x8xf32>
    %59 = vector.multi_reduction <add>, %58, %cst_23 [2] : vector<2x8x8xf32> to vector<2x8xf32>
    %60 = vector.shape_cast %59 : vector<2x8xf32> to vector<2x8x1xf32>
    %61 = tpu.reciprocal %60 : vector<2x8x1xf32> -> vector<2x8x1xf32>
    %62 = vector.broadcast %61 : vector<2x8x1xf32> to vector<2x8x8xf32>
    %63 = arith.mulf %58, %62 : vector<2x8x8xf32>
    "tpu.trace_start"() <{level = 10 : i32, message = "bqk,bkd->bqd"}> : () -> ()
    %cst_24 = arith.constant dense<0.000000e+00> : vector<2x8x8xf32>
    %64 = tpu.matmul %63, %46, %cst_24 {dimension_numbers = #tpu.dot_dimension_numbers<[2], [1], [1], [2], [0, 0, 0, 1, 1, 2], [0], [0]>} : vector<2x8x8xf32>, vector<2x8x8xf32>, vector<2x8x8xf32> -> vector<2x8x8xf32>
    "tpu.trace_stop"() : () -> ()
    %65 = vector.shape_cast %64 : vector<2x8x8xf32> to vector<16x8xf32>
    %66 = vector.extract_strided_slice %17 {offsets = [8, 0], sizes = [8, 32], strides = [1, 1]} : vector<32x32xf32> to vector<8x32xf32>
    %cst_25 = arith.constant dense<0.000000e+00> : vector<16x32xf32>
    %67 = tpu.matmul %65, %66, %cst_25 {dimension_numbers = #tpu.dot_dimension_numbers<[1], [0], [0], [1], [0, 0, 1, 1], [], []>} : vector<16x8xf32>, vector<8x32xf32>, vector<16x32xf32> -> vector<16x32xf32>
    %68 = arith.addf %43, %67 : vector<16x32xf32>
    %69 = vector.extract_strided_slice %12 {offsets = [0, 0, 16], sizes = [2, 8, 8], strides = [1, 1, 1]} : vector<2x8x32xf32> to vector<2x8x8xf32>
    %70 = vector.extract_strided_slice %14 {offsets = [0, 0, 16], sizes = [2, 8, 8], strides = [1, 1, 1]} : vector<2x8x32xf32> to vector<2x8x8xf32>
    %71 = vector.extract_strided_slice %16 {offsets = [0, 0, 16], sizes = [2, 8, 8], strides = [1, 1, 1]} : vector<2x8x32xf32> to vector<2x8x8xf32>
    "tpu.trace_start"() <{level = 10 : i32, message = "bqd,bkd->bqk"}> : () -> ()
    %cst_26 = arith.constant dense<0.000000e+00> : vector<2x8x8xf32>
    %72 = tpu.matmul %69, %70, %cst_26 {dimension_numbers = #tpu.dot_dimension_numbers<[2], [2], [1], [1], [0, 0, 0, 1, 1, 1], [0], [0]>} : vector<2x8x8xf32>, vector<2x8x8xf32>, vector<2x8x8xf32> -> vector<2x8x8xf32>
    "tpu.trace_stop"() : () -> ()
    %cst_27 = arith.constant 0.353553385 : f32
    %73 = vector.broadcast %cst_27 : f32 to vector<2x8x8xf32>
    %74 = arith.mulf %72, %73 : vector<2x8x8xf32>
    %cst_28 = arith.constant -1.000000e+09 : f32
    %75 = vector.shape_cast %5 : vector<2x1x8xi1> to vector<2x1x8xi1>
    %76 = vector.broadcast %75 : vector<2x1x8xi1> to vector<2x8x8xi1>
    %77 = vector.broadcast %cst_28 : f32 to vector<2x8x8xf32>
    %78 = arith.select %76, %77, %74 : vector<2x8x8xi1>, vector<2x8x8xf32>
    %cst_29 = arith.constant dense<0xFF800000> : vector<2x8xf32>
    %79 = vector.multi_reduction <maximumf>, %78, %cst_29 [2] : vector<2x8x8xf32> to vector<2x8xf32>
    %80 = vector.shape_cast %79 : vector<2x8xf32> to vector<2x8x1xf32>
    %81 = vector.broadcast %80 : vector<2x8x1xf32> to vector<2x8x8xf32>
    %82 = arith.subf %78, %81 : vector<2x8x8xf32>
    %83 = math.exp %82 : vector<2x8x8xf32>
    %cst_30 = arith.constant dense<0.000000e+00> : vector<2x8xf32>
    %84 = vector.multi_reduction <add>, %83, %cst_30 [2] : vector<2x8x8xf32> to vector<2x8xf32>
    %85 = vector.shape_cast %84 : vector<2x8xf32> to vector<2x8x1xf32>
    %86 = tpu.reciprocal %85 : vector<2x8x1xf32> -> vector<2x8x1xf32>
    %87 = vector.broadcast %86 : vector<2x8x1xf32> to vector<2x8x8xf32>
    %88 = arith.mulf %83, %87 : vector<2x8x8xf32>
    "tpu.trace_start"() <{level = 10 : i32, message = "bqk,bkd->bqd"}> : () -> ()
    %cst_31 = arith.constant dense<0.000000e+00> : vector<2x8x8xf32>
    %89 = tpu.matmul %88, %71, %cst_31 {dimension_numbers = #tpu.dot_dimension_numbers<[2], [1], [1], [2], [0, 0, 0, 1, 1, 2], [0], [0]>} : vector<2x8x8xf32>, vector<2x8x8xf32>, vector<2x8x8xf32> -> vector<2x8x8xf32>
    "tpu.trace_stop"() : () -> ()
    %90 = vector.shape_cast %89 : vector<2x8x8xf32> to vector<16x8xf32>
    %91 = vector.extract_strided_slice %17 {offsets = [16, 0], sizes = [8, 32], strides = [1, 1]} : vector<32x32xf32> to vector<8x32xf32>
    %cst_32 = arith.constant dense<0.000000e+00> : vector<16x32xf32>
    %92 = tpu.matmul %90, %91, %cst_32 {dimension_numbers = #tpu.dot_dimension_numbers<[1], [0], [0], [1], [0, 0, 1, 1], [], []>} : vector<16x8xf32>, vector<8x32xf32>, vector<16x32xf32> -> vector<16x32xf32>
    %93 = arith.addf %68, %92 : vector<16x32xf32>
    %94 = vector.extract_strided_slice %12 {offsets = [0, 0, 24], sizes = [2, 8, 8], strides = [1, 1, 1]} : vector<2x8x32xf32> to vector<2x8x8xf32>
    %95 = vector.extract_strided_slice %14 {offsets = [0, 0, 24], sizes = [2, 8, 8], strides = [1, 1, 1]} : vector<2x8x32xf32> to vector<2x8x8xf32>
    %96 = vector.extract_strided_slice %16 {offsets = [0, 0, 24], sizes = [2, 8, 8], strides = [1, 1, 1]} : vector<2x8x32xf32> to vector<2x8x8xf32>
    "tpu.trace_start"() <{level = 10 : i32, message = "bqd,bkd->bqk"}> : () -> ()
    %cst_33 = arith.constant dense<0.000000e+00> : vector<2x8x8xf32>
    %97 = tpu.matmul %94, %95, %cst_33 {dimension_numbers = #tpu.dot_dimension_numbers<[2], [2], [1], [1], [0, 0, 0, 1, 1, 1], [0], [0]>} : vector<2x8x8xf32>, vector<2x8x8xf32>, vector<2x8x8xf32> -> vector<2x8x8xf32>
    "tpu.trace_stop"() : () -> ()
    %cst_34 = arith.constant 0.353553385 : f32
    %98 = vector.broadcast %cst_34 : f32 to vector<2x8x8xf32>
    %99 = arith.mulf %97, %98 : vector<2x8x8xf32>
    %cst_35 = arith.constant -1.000000e+09 : f32
    %100 = vector.shape_cast %5 : vector<2x1x8xi1> to vector<2x1x8xi1>
    %101 = vector.broadcast %100 : vector<2x1x8xi1> to vector<2x8x8xi1>
    %102 = vector.broadcast %cst_35 : f32 to vector<2x8x8xf32>
    %103 = arith.select %101, %102, %99 : vector<2x8x8xi1>, vector<2x8x8xf32>
    %cst_36 = arith.constant dense<0xFF800000> : vector<2x8xf32>
    %104 = vector.multi_reduction <maximumf>, %103, %cst_36 [2] : vector<2x8x8xf32> to vector<2x8xf32>
    %105 = vector.shape_cast %104 : vector<2x8xf32> to vector<2x8x1xf32>
    %106 = vector.broadcast %105 : vector<2x8x1xf32> to vector<2x8x8xf32>
    %107 = arith.subf %103, %106 : vector<2x8x8xf32>
    %108 = math.exp %107 : vector<2x8x8xf32>
    %cst_37 = arith.constant dense<0.000000e+00> : vector<2x8xf32>
    %109 = vector.multi_reduction <add>, %108, %cst_37 [2] : vector<2x8x8xf32> to vector<2x8xf32>
    %110 = vector.shape_cast %109 : vector<2x8xf32> to vector<2x8x1xf32>
    %111 = tpu.reciprocal %110 : vector<2x8x1xf32> -> vector<2x8x1xf32>
    %112 = vector.broadcast %111 : vector<2x8x1xf32> to vector<2x8x8xf32>
    %113 = arith.mulf %108, %112 : vector<2x8x8xf32>
    "tpu.trace_start"() <{level = 10 : i32, message = "bqk,bkd->bqd"}> : () -> ()
    %cst_38 = arith.constant dense<0.000000e+00> : vector<2x8x8xf32>
    %114 = tpu.matmul %113, %96, %cst_38 {dimension_numbers = #tpu.dot_dimension_numbers<[2], [1], [1], [2], [0, 0, 0, 1, 1, 2], [0], [0]>} : vector<2x8x8xf32>, vector<2x8x8xf32>, vector<2x8x8xf32> -> vector<2x8x8xf32>
    "tpu.trace_stop"() : () -> ()
    %115 = vector.shape_cast %114 : vector<2x8x8xf32> to vector<16x8xf32>
    %116 = vector.extract_strided_slice %17 {offsets = [24, 0], sizes = [8, 32], strides = [1, 1]} : vector<32x32xf32> to vector<8x32xf32>
    %cst_39 = arith.constant dense<0.000000e+00> : vector<16x32xf32>
    %117 = tpu.matmul %115, %116, %cst_39 {dimension_numbers = #tpu.dot_dimension_numbers<[1], [0], [0], [1], [0, 0, 1, 1], [], []>} : vector<16x8xf32>, vector<8x32xf32>, vector<16x32xf32> -> vector<16x32xf32>
    %118 = arith.addf %93, %117 : vector<16x32xf32>
    %c0_40 = arith.constant 0 : index
    %c0_41 = arith.constant 0 : index
    %119 = vector.load %arg6[%c0_40, %c0_41] : memref<1x32xf32, #tpu.memory_space<vmem>>, vector<1x32xf32>
    %120 = vector.broadcast %119 : vector<1x32xf32> to vector<16x32xf32>
    %121 = arith.addf %118, %120 : vector<16x32xf32>
    %122 = arith.addf %1, %121 : vector<16x32xf32>
    %cst_42 = arith.constant dense<0.000000e+00> : vector<16xf32>
    %123 = vector.multi_reduction <add>, %122, %cst_42 [1] : vector<16x32xf32> to vector<16xf32>
    %124 = vector.shape_cast %123 : vector<16xf32> to vector<16x1xf32>
    %cst_43 = arith.constant 3.200000e+01 : f32
    %125 = vector.broadcast %cst_43 : f32 to vector<16x1xf32>
    %126 = arith.divf %124, %125 : vector<16x1xf32>
    %127 = vector.broadcast %126 : vector<16x1xf32> to vector<16x32xf32>
    %128 = arith.subf %122, %127 : vector<16x32xf32>
    %129 = arith.mulf %128, %128 : vector<16x32xf32>
    %cst_44 = arith.constant dense<0.000000e+00> : vector<16xf32>
    %130 = vector.multi_reduction <add>, %129, %cst_44 [1] : vector<16x32xf32> to vector<16xf32>
    %131 = vector.shape_cast %130 : vector<16xf32> to vector<16x1xf32>
    %cst_45 = arith.constant 3.100000e+01 : f32
    %132 = vector.broadcast %cst_45 : f32 to vector<16x1xf32>
    %133 = arith.divf %131, %132 : vector<16x1xf32>
    %134 = math.sqrt %133 : vector<16x1xf32>
    %c0_46 = arith.constant 0 : index
    %c0_47 = arith.constant 0 : index
    %135 = vector.load %arg11[%c0_46, %c0_47] : memref<1x32xf32, #tpu.memory_space<vmem>>, vector<1x32xf32>
    %136 = vector.broadcast %135 : vector<1x32xf32> to vector<16x32xf32>
    %137 = arith.mulf %136, %128 : vector<16x32xf32>
    %cst_48 = arith.constant 9.99999997E-7 : f32
    %138 = vector.broadcast %cst_48 : f32 to vector<16x1xf32>
    %139 = arith.addf %134, %138 : vector<16x1xf32>
    %140 = vector.broadcast %139 : vector<16x1xf32> to vector<16x32xf32>
    %141 = arith.divf %137, %140 : vector<16x32xf32>
    %c0_49 = arith.constant 0 : index
    %c0_50 = arith.constant 0 : index
    %142 = vector.load %arg12[%c0_49, %c0_50] : memref<1x32xf32, #tpu.memory_space<vmem>>, vector<1x32xf32>
    %143 = vector.broadcast %142 : vector<1x32xf32> to vector<16x32xf32>
    %144 = arith.addf %141, %143 : vector<16x32xf32>
    %c0_51 = arith.constant 0 : index
    %c0_52 = arith.constant 0 : index
    %145 = vector.load %arg7[%c0_51, %c0_52] : memref<32x64xf32, #tpu.memory_space<vmem>>, vector<32x64xf32>
    %cst_53 = arith.constant dense<0.000000e+00> : vector<16x64xf32>
    %146 = tpu.matmul %144, %145, %cst_53 {dimension_numbers = #tpu.dot_dimension_numbers<[1], [0], [0], [1], [0, 0, 1, 1], [], []>} : vector<16x32xf32>, vector<32x64xf32>, vector<16x64xf32> -> vector<16x64xf32>
    %c0_54 = arith.constant 0 : index
    %c0_55 = arith.constant 0 : index
    %147 = vector.load %arg8[%c0_54, %c0_55] : memref<1x64xf32, #tpu.memory_space<vmem>>, vector<1x64xf32>
    %148 = vector.broadcast %147 : vector<1x64xf32> to vector<16x64xf32>
    %149 = arith.addf %146, %148 : vector<16x64xf32>
    %cst_56 = arith.constant 0.000000e+00 : f32
    %150 = vector.broadcast %cst_56 : f32 to vector<16x64xf32>
    %151 = arith.maximumf %149, %150 : vector<16x64xf32>
    %c0_57 = arith.constant 0 : index
    %c0_58 = arith.constant 0 : index
    %152 = vector.load %arg9[%c0_57, %c0_58] : memref<64x32xf32, #tpu.memory_space<vmem>>, vector<64x32xf32>
    %cst_59 = arith.constant dense<0.000000e+00> : vector<16x32xf32>
    %153 = tpu.matmul %151, %152, %cst_59 {dimension_numbers = #tpu.dot_dimension_numbers<[1], [0], [0], [1], [0, 0, 1, 1], [], []>} : vector<16x64xf32>, vector<64x32xf32>, vector<16x32xf32> -> vector<16x32xf32>
    %c0_60 = arith.constant 0 : index
    %c0_61 = arith.constant 0 : index
    %154 = vector.load %arg10[%c0_60, %c0_61] : memref<1x32xf32, #tpu.memory_space<vmem>>, vector<1x32xf32>
    %155 = vector.broadcast %154 : vector<1x32xf32> to vector<16x32xf32>
    %156 = arith.addf %153, %155 : vector<16x32xf32>
    %157 = arith.addf %144, %156 : vector<16x32xf32>
    %cst_62 = arith.constant dense<0.000000e+00> : vector<16xf32>
    %158 = vector.multi_reduction <add>, %157, %cst_62 [1] : vector<16x32xf32> to vector<16xf32>
    %159 = vector.shape_cast %158 : vector<16xf32> to vector<16x1xf32>
    %cst_63 = arith.constant 3.200000e+01 : f32
    %160 = vector.broadcast %cst_63 : f32 to vector<16x1xf32>
    %161 = arith.divf %159, %160 : vector<16x1xf32>
    %162 = vector.broadcast %161 : vector<16x1xf32> to vector<16x32xf32>
    %163 = arith.subf %157, %162 : vector<16x32xf32>
    %164 = arith.mulf %163, %163 : vector<16x32xf32>
    %cst_64 = arith.constant dense<0.000000e+00> : vector<16xf32>
    %165 = vector.multi_reduction <add>, %164, %cst_64 [1] : vector<16x32xf32> to vector<16xf32>
    %166 = vector.shape_cast %165 : vector<16xf32> to vector<16x1xf32>
    %cst_65 = arith.constant 3.100000e+01 : f32
    %167 = vector.broadcast %cst_65 : f32 to vector<16x1xf32>
    %168 = arith.divf %166, %167 : vector<16x1xf32>
    %169 = math.sqrt %168 : vector<16x1xf32>
    %c0_66 = arith.constant 0 : index
    %c0_67 = arith.constant 0 : index
    %170 = vector.load %arg13[%c0_66, %c0_67] : memref<1x32xf32, #tpu.memory_space<vmem>>, vector<1x32xf32>
    %171 = vector.broadcast %170 : vector<1x32xf32> to vector<16x32xf32>
    %172 = arith.mulf %171, %163 : vector<16x32xf32>
    %cst_68 = arith.constant 9.99999997E-7 : f32
    %173 = vector.broadcast %cst_68 : f32 to vector<16x1xf32>
    %174 = arith.addf %169, %173 : vector<16x1xf32>
    %175 = vector.broadcast %174 : vector<16x1xf32> to vector<16x32xf32>
    %176 = arith.divf %172, %175 : vector<16x32xf32>
    %c0_69 = arith.constant 0 : index
    %c0_70 = arith.constant 0 : index
    %177 = vector.load %arg14[%c0_69, %c0_70] : memref<1x32xf32, #tpu.memory_space<vmem>>, vector<1x32xf32>
    %178 = vector.broadcast %177 : vector<1x32xf32> to vector<16x32xf32>
    %179 = arith.addf %176, %178 : vector<16x32xf32>
    %180 = vector.extract_strided_slice %179 {offsets = [0, 0], sizes = [8, 32], strides = [1, 1]} : vector<16x32xf32> to vector<8x32xf32>
    %181 = vector.extract_strided_slice %180 {offsets = [0, 0], sizes = [1, 32], strides = [1, 1]} : vector<8x32xf32> to vector<1x32xf32>
    %182 = vector.extract_strided_slice %180 {offsets = [1, 0], sizes = [1, 32], strides = [1, 1]} : vector<8x32xf32> to vector<1x32xf32>
    %183 = vector.extract_strided_slice %180 {offsets = [2, 0], sizes = [1, 32], strides = [1, 1]} : vector<8x32xf32> to vector<1x32xf32>
    %184 = vector.extract_strided_slice %180 {offsets = [3, 0], sizes = [1, 32], strides = [1, 1]} : vector<8x32xf32> to vector<1x32xf32>
    %185 = vector.extract_strided_slice %180 {offsets = [4, 0], sizes = [1, 32], strides = [1, 1]} : vector<8x32xf32> to vector<1x32xf32>
    %186 = vector.extract_strided_slice %180 {offsets = [5, 0], sizes = [1, 32], strides = [1, 1]} : vector<8x32xf32> to vector<1x32xf32>
    %187 = vector.extract_strided_slice %180 {offsets = [6, 0], sizes = [1, 32], strides = [1, 1]} : vector<8x32xf32> to vector<1x32xf32>
    %188 = vector.extract_strided_slice %180 {offsets = [7, 0], sizes = [1, 32], strides = [1, 1]} : vector<8x32xf32> to vector<1x32xf32>
    %189 = tpu.concatenate %181, %182, %183, %184, %185, %186, %187, %188 in 1 : vector<1x32xf32>, vector<1x32xf32>, vector<1x32xf32>, vector<1x32xf32>, vector<1x32xf32>, vector<1x32xf32>, vector<1x32xf32>, vector<1x32xf32> -> vector<1x256xf32>
    %190 = vector.extract_strided_slice %179 {offsets = [8, 0], sizes = [8, 32], strides = [1, 1]} : vector<16x32xf32> to vector<8x32xf32>
    %191 = vector.extract_strided_slice %190 {offsets = [0, 0], sizes = [1, 32], strides = [1, 1]} : vector<8x32xf32> to vector<1x32xf32>
    %192 = vector.extract_strided_slice %190 {offsets = [1, 0], sizes = [1, 32], strides = [1, 1]} : vector<8x32xf32> to vector<1x32xf32>
    %193 = vector.extract_strided_slice %190 {offsets = [2, 0], sizes = [1, 32], strides = [1, 1]} : vector<8x32xf32> to vector<1x32xf32>
    %194 = vector.extract_strided_slice %190 {offsets = [3, 0], sizes = [1, 32], strides = [1, 1]} : vector<8x32xf32> to vector<1x32xf32>
    %195 = vector.extract_strided_slice %190 {offsets = [4, 0], sizes = [1, 32], strides = [1, 1]} : vector<8x32xf32> to vector<1x32xf32>
    %196 = vector.extract_strided_slice %190 {offsets = [5, 0], sizes = [1, 32], strides = [1, 1]} : vector<8x32xf32> to vector<1x32xf32>
    %197 = vector.extract_strided_slice %190 {offsets = [6, 0], sizes = [1, 32], strides = [1, 1]} : vector<8x32xf32> to vector<1x32xf32>
    %198 = vector.extract_strided_slice %190 {offsets = [7, 0], sizes = [1, 32], strides = [1, 1]} : vector<8x32xf32> to vector<1x32xf32>
    %199 = tpu.concatenate %191, %192, %193, %194, %195, %196, %197, %198 in 1 : vector<1x32xf32>, vector<1x32xf32>, vector<1x32xf32>, vector<1x32xf32>, vector<1x32xf32>, vector<1x32xf32>, vector<1x32xf32>, vector<1x32xf32> -> vector<1x256xf32>
    %200 = tpu.concatenate %189, %199 in 0 : vector<1x256xf32>, vector<1x256xf32> -> vector<2x256xf32>
    %c0_71 = arith.constant 0 : index
    %c0_72 = arith.constant 0 : index
    %201 = vector.load %arg15[%c0_71, %c0_72] : memref<2x256xf32, #tpu.memory_space<vmem>>, vector<2x256xf32>
    tpu.vector_store %arg15[%c0_71, %c0_72], %200 {strides = array<i32>} : memref<2x256xf32, #tpu.memory_space<vmem>>, vector<2x256xf32>,
    return
  }
  func.func @transform_0(%arg0: i32) -> (i32, i32, i32) {
    %c0_i32 = arith.constant 0 : i32
    %c0_i32_0 = arith.constant 0 : i32
    %c0_i32_1 = arith.constant 0 : i32
    return %arg0, %c0_i32, %c0_i32_0 : i32, i32, i32
  }
  func.func @transform_1(%arg0: i32) -> (i32, i32) {
    %c0_i32 = arith.constant 0 : i32
    %c0_i32_0 = arith.constant 0 : i32
    return %arg0, %c0_i32 : i32, i32
  }
  func.func @transform_2(%arg0: i32) -> (i32, i32) {
    %c0_i32 = arith.constant 0 : i32
    %c0_i32_0 = arith.constant 0 : i32
    %c0_i32_1 = arith.constant 0 : i32
    return %c0_i32, %c0_i32_0 : i32, i32
  }
  func.func @transform_3(%arg0: i32) -> (i32, i32) {
    %c0_i32 = arith.constant 0 : i32
    %c0_i32_0 = arith.constant 0 : i32
    %c0_i32_1 = arith.constant 0 : i32
    return %c0_i32, %c0_i32_0 : i32, i32
  }
  func.func @transform_4(%arg0: i32) -> (i32, i32) {
    %c0_i32 = arith.constant 0 : i32
    %c0_i32_0 = arith.constant 0 : i32
    %c0_i32_1 = arith.constant 0 : i32
    return %c0_i32, %c0_i32_0 : i32, i32
  }
  func.func @transform_5(%arg0: i32) -> (i32, i32) {
    %c0_i32 = arith.constant 0 : i32
    %c0_i32_0 = arith.constant 0 : i32
    %c0_i32_1 = arith.constant 0 : i32
    return %c0_i32, %c0_i32_0 : i32, i32
  }
  func.func @transform_6(%arg0: i32) -> (i32, i32) {
    %c0_i32 = arith.constant 0 : i32
    %c0_i32_0 = arith.constant 0 : i32
    %c0_i32_1 = arith.constant 0 : i32
    return %c0_i32, %c0_i32_0 : i32, i32
  }
  func.func @transform_7(%arg0: i32) -> (i32, i32) {
    %c0_i32 = arith.constant 0 : i32
    %c0_i32_0 = arith.constant 0 : i32
    %c0_i32_1 = arith.constant 0 : i32
    return %c0_i32, %c0_i32_0 : i32, i32
  }
  func.func @transform_8(%arg0: i32) -> (i32, i32) {
    %c0_i32 = arith.constant 0 : i32
    %c0_i32_0 = arith.constant 0 : i32
    %c0_i32_1 = arith.constant 0 : i32
    return %c0_i32, %c0_i32_0 : i32, i32
  }
  func.func @transform_9(%arg0: i32) -> (i32, i32) {
    %c0_i32 = arith.constant 0 : i32
    %c0_i32_0 = arith.constant 0 : i32
    %c0_i32_1 = arith.constant 0 : i32
    return %c0_i32, %c0_i32_0 : i32, i32
  }
  func.func @transform_10(%arg0: i32) -> (i32, i32) {
    %c0_i32 = arith.constant 0 : i32
    %c0_i32_0 = arith.constant 0 : i32
    %c0_i32_1 = arith.constant 0 : i32
    return %c0_i32, %c0_i32_0 : i32, i32
  }
  func.func @transform_11(%arg0: i32) -> (i32, i32) {
    %c0_i32 = arith.constant 0 : i32
    %c0_i32_0 = arith.constant 0 : i32
    %c0_i32_1 = arith.constant 0 : i32
    return %c0_i32, %c0_i32_0 : i32, i32
  }
  func.func @transform_12(%arg0: i32) -> (i32, i32) {
    %c0_i32 = arith.constant 0 : i32
    %c0_i32_0 = arith.constant 0 : i32
    %c0_i32_1 = arith.constant 0 : i32
    return %c0_i32, %c0_i32_0 : i32, i32
  }
  func.func @transform_13(%arg0: i32) -> (i32, i32) {
    %c0_i32 = arith.constant 0 : i32
    %c0_i32_0 = arith.constant 0 : i32
    %c0_i32_1 = arith.constant 0 : i32
    return %c0_i32, %c0_i32_0 : i32, i32
  }
  func.func @transform_14(%arg0: i32) -> (i32, i32) {
    %c0_i32 = arith.constant 0 : i32
    %c0_i32_0 = arith.constant 0 : i32
    return %arg0, %c0_i32 : i32, i32
  }
}

</mosaic_0001>

<llo_original>
// kernel: tpu_custom_call.1
$region0: #{tpu_custom_call.1}
  #allocation0 [shape = 'u32[]', space=smem, size = 0x4, offset = 0x4, fixed_abs, tag = 'smem constant byte address 0x4 - core index']
  #allocation1 [shape = 'u32[144,128]{1,0:T(1,128)}', space=vmem, size = 0x12000, scoped, tag = 'internal scratch']
  %s0 = inlined_call_operand.hbm [shape: f32[2,8,32], index: 0, kind: input, shape index: {}]
  %s1 = inlined_call_operand.vmem [shape: f32[2,8], index: 1, kind: input, shape index: {}]
  %s2 = inlined_call_operand.vmem [shape: f32[32,96], index: 2, kind: input, shape index: {}]
  %s3 = inlined_call_operand.vmem [shape: f32[1,96], index: 3, kind: input, shape index: {}]
  %s4 = inlined_call_operand.vmem [shape: f32[32,32], index: 4, kind: input, shape index: {}]
  %s5 = inlined_call_operand.vmem [shape: f32[1,32], index: 5, kind: input, shape index: {}]
  %s6 = inlined_call_operand.vmem [shape: f32[32,64], index: 6, kind: input, shape index: {}]
  %s7 = inlined_call_operand.vmem [shape: f32[1,64], index: 7, kind: input, shape index: {}]
  %s8 = inlined_call_operand.vmem [shape: f32[64,32], index: 8, kind: input, shape index: {}]
  %s9 = inlined_call_operand.vmem [shape: f32[1,32], index: 9, kind: input, shape index: {}]
  %s10 = inlined_call_operand.vmem [shape: f32[1,32], index: 10, kind: input, shape index: {}]
  %s11 = inlined_call_operand.vmem [shape: f32[1,32], index: 11, kind: input, shape index: {}]
  %s12 = inlined_call_operand.vmem [shape: f32[1,32], index: 12, kind: input, shape index: {}]
  %s13 = inlined_call_operand.vmem [shape: f32[1,32], index: 13, kind: input, shape index: {}]
  %s14 = inlined_call_operand.hbm [shape: f32[2,256], index: 14, kind: output, shape index: {}]
  %s15 = sld [smem:[#allocation0]]
  $region70: #{tpu_custom_call.1} parent=0
    _
  %s17 = ssub.s32 1, %s15
  %s18 = scalar_select 0, %s17, %s15
  $region1: #{tpu_custom_call.1} parent=0
    #allocation2 [shape = 'u8[8192]{0}', space=vmem, size = 0x2000, scoped, tag = 'input window, operand 0, single buffered']
    #allocation3 [shape = 's32[1]{0}', space=sflag, size = 0x4, scoped, tag = 'scoped memory for tpu_custom_call.1']
    #allocation4 [shape = 's32[1]{0}', space=sflag, size = 0x4, scoped, tag = 'scoped memory for tpu_custom_call.1']
    #allocation5 [shape = 'u8[2048]{0}', space=vmem, size = 0x800, scoped, tag = 'output window, operand 0, single buffered']
    %19 = vsyncpa [#allocation3], 0
    %20 = vsyncpa [#allocation4], 0
    // Predicated region
    $region2: #{tpu_custom_call.1} parent=1 // pred_check
      _
    $region3: #{tpu_custom_call.1} parent=1 // pred_check_branch
      %22 = sbr.rel (0) target = $region5
    $region4: #{tpu_custom_call.1} parent=1 // pred_region
      %s24 = ssub.s32 256, 256
      %25 = vsyncadd [#allocation3], %s24
      %s26 = sshll.u32 [#allocation2], 4
      %s27 = int_to_ptr.vmem [resolvable:$true] %s26
      %32 = dma.hbm_to_vmem [thread:$0]  %s0, 256, %s27, [#allocation3], 128, 128, 8
    $region5: #{tpu_custom_call.1} parent=1 // pred_fallthru
      _
    // Predicated region
    $region6: #{tpu_custom_call.1} parent=1 // pred_check
      _
    $region7: #{tpu_custom_call.1} parent=1 // pred_check_branch
      %34 = sbr.rel (0) target = $region9
    $region8: #{tpu_custom_call.1} parent=1 // pred_region
      _
    $region9: #{tpu_custom_call.1} parent=1 // pred_fallthru
      _
    // Predicated region
    $region10: #{tpu_custom_call.1} parent=1 // pred_check
      _
    $region11: #{tpu_custom_call.1} parent=1 // pred_check_branch
      %36 = sbr.rel (0) target = $region13
    $region12: #{tpu_custom_call.1} parent=1 // pred_region
      _
    $region13: #{tpu_custom_call.1} parent=1 // pred_fallthru
      _
    // Predicated region
    $region14: #{tpu_custom_call.1} parent=1 // pred_check
      _
    $region15: #{tpu_custom_call.1} parent=1 // pred_check_branch
      %38 = sbr.rel (0) target = $region17
    $region16: #{tpu_custom_call.1} parent=1 // pred_region
      _
    $region17: #{tpu_custom_call.1} parent=1 // pred_fallthru
      _
    // Predicated region
    $region18: #{tpu_custom_call.1} parent=1 // pred_check
      _
    $region19: #{tpu_custom_call.1} parent=1 // pred_check_branch
      %40 = sbr.rel (0) target = $region21
    $region20: #{tpu_custom_call.1} parent=1 // pred_region
      _
    $region21: #{tpu_custom_call.1} parent=1 // pred_fallthru
      _
    // Predicated region
    $region22: #{tpu_custom_call.1} parent=1 // pred_check
      _
    $region23: #{tpu_custom_call.1} parent=1 // pred_check_branch
      %42 = sbr.rel (0) target = $region25
    $region24: #{tpu_custom_call.1} parent=1 // pred_region
      _
    $region25: #{tpu_custom_call.1} parent=1 // pred_fallthru
      _
    // Predicated region
    $region26: #{tpu_custom_call.1} parent=1 // pred_check
      _
    $region27: #{tpu_custom_call.1} parent=1 // pred_check_branch
      %44 = sbr.rel (0) target = $region29
    $region28: #{tpu_custom_call.1} parent=1 // pred_region
      _
    $region29: #{tpu_custom_call.1} parent=1 // pred_fallthru
      _
    // Predicated region
    $region30: #{tpu_custom_call.1} parent=1 // pred_check
      _
    $region31: #{tpu_custom_call.1} parent=1 // pred_check_branch
      %46 = sbr.rel (0) target = $region33
    $region32: #{tpu_custom_call.1} parent=1 // pred_region
      _
    $region33: #{tpu_custom_call.1} parent=1 // pred_fallthru
      _
    // Predicated region
    $region34: #{tpu_custom_call.1} parent=1 // pred_check
      _
    $region35: #{tpu_custom_call.1} parent=1 // pred_check_branch
      %48 = sbr.rel (0) target = $region37
    $region36: #{tpu_custom_call.1} parent=1 // pred_region
      _
    $region37: #{tpu_custom_call.1} parent=1 // pred_fallthru
      _
    // Predicated region
    $region38: #{tpu_custom_call.1} parent=1 // pred_check
      _
    $region39: #{tpu_custom_call.1} parent=1 // pred_check_branch
      %50 = sbr.rel (0) target = $region41
    $region40: #{tpu_custom_call.1} parent=1 // pred_region
      _
    $region41: #{tpu_custom_call.1} parent=1 // pred_fallthru
      _
    // Predicated region
    $region42: #{tpu_custom_call.1} parent=1 // pred_check
      _
    $region43: #{tpu_custom_call.1} parent=1 // pred_check_branch
      %52 = sbr.rel (0) target = $region45
    $region44: #{tpu_custom_call.1} parent=1 // pred_region
      _
    $region45: #{tpu_custom_call.1} parent=1 // pred_fallthru
      _
    // Predicated region
    $region46: #{tpu_custom_call.1} parent=1 // pred_check
      _
    $region47: #{tpu_custom_call.1} parent=1 // pred_check_branch
      %54 = sbr.rel (0) target = $region49
    $region48: #{tpu_custom_call.1} parent=1 // pred_region
      _
    $region49: #{tpu_custom_call.1} parent=1 // pred_fallthru
      _
    // Predicated region
    $region50: #{tpu_custom_call.1} parent=1 // pred_check
      _
    $region51: #{tpu_custom_call.1} parent=1 // pred_check_branch
      %56 = sbr.rel (0) target = $region53
    $region52: #{tpu_custom_call.1} parent=1 // pred_region
      _
    $region53: #{tpu_custom_call.1} parent=1 // pred_fallthru
      _
    // Predicated region
    $region54: #{tpu_custom_call.1} parent=1 // pred_check
      _
    $region55: #{tpu_custom_call.1} parent=1 // pred_check_branch
      %58 = sbr.rel (0) target = $region57
    $region56: #{tpu_custom_call.1} parent=1 // pred_region
      _
    $region57: #{tpu_custom_call.1} parent=1 // pred_fallthru
      _
    // Predicated region
    $region58: #{tpu_custom_call.1} parent=1 // pred_check
      _
    $region59: #{tpu_custom_call.1} parent=1 // pred_check_branch
      %60 = sbr.rel (0) target = $region61
    $region60: #{tpu_custom_call.1} parent=1 // pred_region
      %61 = dma.done [#allocation3], 256
    $region61: #{tpu_custom_call.1} parent=1 // pred_fallthru
      _
    %v62 = vld [vmem:[#allocation2] sm:$0xff]
    %v63 = vld [vmem:[#allocation2 + $0x8] sm:$0xff]
    %v64 = vld [vmem:[%s1] sm:$0x3]
    %vm65 = vcmp.gt.f32.partialorder %v64, 0.5
    %v66 = vsel %vm65, 1, 0
    %v68 = vunpack.c.l.s4 1966171168
    %v69 = vunpack.c.0.s8 %v68
    %v70 = vlaneseq
    %v71 = vshrl.u32 %v70, 7
    %v72 = vsub.s32 %v69, %v71
    %v73 = vrot.slane %v66, %v72
    %v74 = vcombine.high %v73, %v73
    %v76 = vunpack.c.l.s4 1966171168
    %v77 = vunpack.c.0.s8 %v76
    %v78 = vlaneseq
    %v79 = vshrl.u32 %v78, 7
    %v80 = vsub.s32 %v77, %v79
    %v81 = vrot.slane %v73, %v80
    %v83 = vunpack.c.l.s4 1966171168
    %v84 = vunpack.c.0.s8 %v83
    %v85 = vlaneseq
    %v86 = vshrl.u32 %v85, 7
    %v87 = vsub.s32 %v84, %v86
    %v88 = vrot.slane %v74, %v87
    %vm89 = vcmp.ne.s32.totalorder %v81, 0
    %vm90 = vcmp.ne.s32.totalorder %v88, 0
    %v91 = vld [vmem:[%s2] sm:$0xff]
    %v92 = vld [vmem:[%s2 + $0x8] sm:$0xff]
    %v93 = vld [vmem:[%s2 + $0x10] sm:$0xff]
    %v94 = vld [vmem:[%s2 + $0x18] sm:$0xff]
    %v95 = vld [vmem:[%s3] sm:$0x1]
    %v97 = vlaneseq
    %v98 = vshrl.u32 %v97, 7
    %v99 = vsub.s32 0, %v98
    %v100 = vrot.slane %v95, %v99
    %vm102 = vcmask 261120
    %v104 = vsel %vm102, %v62, 0
    %v107 = vsel %vm102, %v63, 0
    %109 = vmatprep.subr.mxu0 0.0
    %110 = vmatpush1.msra.mxu0 %v91
    %111 = vmatprep.subr.mxu0 0.0
    %112 = vmatpush1.msra.mxu0 %v92
    %113 = vmatprep.subr.mxu0 0.0
    %114 = vmatpush1.msra.mxu0 %v93
    %115 = vmatprep.subr.mxu0 0.0
    %116 = vmatpush1.msra.mxu0 %v94
    %117 = vmatprep.subr.mxu0 0.0
    %118 = vmatpush1.msra.mxu0 0.0
    %119 = vmatprep.subr.mxu0 0.0
    %120 = vmatpush1.msra.mxu0 0.0
    %121 = vmatprep.subr.mxu0 0.0
    %122 = vmatpush1.msra.mxu0 0.0
    %123 = vmatprep.subr.mxu0 0.0
    %124 = vmatpush1.msra.mxu0 0.0
    %125 = vmatprep.subr.mxu0 0.0
    %126 = vmatpush1.msra.mxu0 0.0
    %127 = vmatprep.subr.mxu0 0.0
    %128 = vmatpush1.msra.mxu0 0.0
    %129 = vmatprep.subr.mxu0 0.0
    %130 = vmatpush1.msra.mxu0 0.0
    %131 = vmatprep.subr.mxu0 0.0
    %132 = vmatpush1.msra.mxu0 0.0
    %133 = vmatprep.subr.mxu0 0.0
    %134 = vmatpush1.msra.mxu0 0.0
    %135 = vmatprep.subr.mxu0 0.0
    %136 = vmatpush1.msra.mxu0 0.0
    %137 = vmatprep.subr.mxu0 0.0
    %138 = vmatpush1.msra.mxu0 0.0
    %139 = vmatprep.subr.mxu0 0.0
    %140 = vmatpush1.msra.mxu0 0.0
    %141 = vmatprep.subr.mxu0 0.0
    %142 = vmatpush1.msra.mxu0 0.0
    %143 = vmatprep.subr.mxu0 0.0
    %144 = vmatpush1.msra.mxu0 0.0
    %145 = vmatprep.subr.mxu0 0.0
    %146 = vmatpush1.msra.mxu0 0.0
    %147 = vmatprep.subr.mxu0 0.0
    %148 = vmatpush1.msra.mxu0 0.0
    %149 = vmatprep.subr.mxu0 0.0
    %150 = vmatpush1.msra.mxu0 0.0
    %151 = vmatprep.subr.mxu0 0.0
    %152 = vmatpush1.msra.mxu0 0.0
    %153 = vmatprep.subr.mxu0 0.0
    %154 = vmatpush1.msra.mxu0 0.0
    %155 = vmatprep.subr.mxu0 0.0
    %156 = vmatpush1.msra.mxu0 0.0
    %157 = vmatprep.subr.mxu0 0.0
    %158 = vmatpush1.msra.mxu0 0.0
    %159 = vmatprep.subr.mxu0 0.0
    %160 = vmatpush1.msra.mxu0 0.0
    %161 = vmatprep.subr.mxu0 0.0
    %162 = vmatpush1.msra.mxu0 0.0
    %163 = vmatprep.subr.mxu0 0.0
    %164 = vmatpush1.msra.mxu0 0.0
    %165 = vmatprep.subr.mxu0 0.0
    %166 = vmatpush1.msra.mxu0 0.0
    %167 = vmatprep.subr.mxu0 0.0
    %168 = vmatpush1.msra.mxu0 0.0
    %169 = vmatprep.subr.mxu0 0.0
    %170 = vmatpush1.msra.mxu0 0.0
    %171 = vmatprep.subr.mxu0 0.0
    %172 = vmatpush1.msra.mxu0 0.0
    %173 = vmatprep.mubr.f32.mxu0 0.0
    %174 = vmatmul.mubr.f32.gmra.mrb[0].mxu0 %v104
    %v175 = vpop.f32.mrb[0].mxu0
    %v176 = vadd.f32 %v100, %v175
    %v177 = vpop.f32.mrb[0].mxu0
    %178 = vmatprep.mubr.f32.mxu0 0.0
    %179 = vmatmul.mubr.f32.gmra.mrb[0].mxu0 %v107
    %v180 = vpop.f32.mrb[0].mxu0
    %v181 = vadd.f32 %v100, %v180
    %v182 = vpop.f32.mrb[0].mxu0
    %183 = vdwg.mxu0
    %v184 = vld [vmem:[%s4] sm:$0xff]
    %v185 = vld [vmem:[%s4 + $0x8] sm:$0xff]
    %v186 = vld [vmem:[%s4 + $0x10] sm:$0xff]
    %v187 = vld [vmem:[%s4 + $0x18] sm:$0xff]
    %189 = vrot.lane.b32.xlu0 %v176, 96
    %v190 = vpop.permute.xlu0 %189
    %vm191 = vcmask 64512
    %v192 = vsel %vm191, %v176, 0
    %v194 = vsel %vm191, %v190, 0
    %196 = vmatprep.subr.mxu0 0.0
    %197 = vmatpush1.xpose.msra.mxu0 %v194
    %198 = vmatprep.subr.mxu0 0.0
    %199 = vmatpush1.xpose.msra.mxu0 0.0
    %200 = vmatprep.subr.mxu0 0.0
    %201 = vmatpush1.xpose.msra.mxu0 0.0
    %202 = vmatprep.subr.mxu0 0.0
    %203 = vmatpush1.xpose.msra.mxu0 0.0
    %204 = vmatprep.subr.mxu0 0.0
    %205 = vmatpush1.xpose.msra.mxu0 0.0
    %206 = vmatprep.subr.mxu0 0.0
    %207 = vmatpush1.xpose.msra.mxu0 0.0
    %208 = vmatprep.subr.mxu0 0.0
    %209 = vmatpush1.xpose.msra.mxu0 0.0
    %210 = vmatprep.subr.mxu0 0.0
    %211 = vmatpush1.xpose.msra.mxu0 0.0
    %212 = vmatprep.subr.mxu0 0.0
    %213 = vmatpush1.xpose.msra.mxu0 0.0
    %214 = vmatprep.subr.mxu0 0.0
    %215 = vmatpush1.xpose.msra.mxu0 0.0
    %216 = vmatprep.subr.mxu0 0.0
    %217 = vmatpush1.xpose.msra.mxu0 0.0
    %218 = vmatprep.subr.mxu0 0.0
    %219 = vmatpush1.xpose.msra.mxu0 0.0
    %220 = vmatprep.subr.mxu0 0.0
    %221 = vmatpush1.xpose.msra.mxu0 0.0
    %222 = vmatprep.subr.mxu0 0.0
    %223 = vmatpush1.xpose.msra.mxu0 0.0
    %224 = vmatprep.subr.mxu0 0.0
    %225 = vmatpush1.xpose.msra.mxu0 0.0
    %226 = vmatprep.subr.mxu0 0.0
    %227 = vmatpush1.xpose.msra.mxu0 0.0
    %228 = vmatprep.subr.mxu0 0.0
    %229 = vmatpush1.xpose.msra.mxu0 0.0
    %230 = vmatprep.subr.mxu0 0.0
    %231 = vmatpush1.xpose.msra.mxu0 0.0
    %232 = vmatprep.subr.mxu0 0.0
    %233 = vmatpush1.xpose.msra.mxu0 0.0
    %234 = vmatprep.subr.mxu0 0.0
    %235 = vmatpush1.xpose.msra.mxu0 0.0
    %236 = vmatprep.subr.mxu0 0.0
    %237 = vmatpush1.xpose.msra.mxu0 0.0
    %238 = vmatprep.subr.mxu0 0.0
    %239 = vmatpush1.xpose.msra.mxu0 0.0
    %240 = vmatprep.subr.mxu0 0.0
    %241 = vmatpush1.xpose.msra.mxu0 0.0
    %242 = vmatprep.subr.mxu0 0.0
    %243 = vmatpush1.xpose.msra.mxu0 0.0
    %244 = vmatprep.subr.mxu0 0.0
    %245 = vmatpush1.xpose.msra.mxu0 0.0
    %246 = vmatprep.subr.mxu0 0.0
    %247 = vmatpush1.xpose.msra.mxu0 0.0
    %248 = vmatprep.subr.mxu0 0.0
    %249 = vmatpush1.xpose.msra.mxu0 0.0
    %250 = vmatprep.subr.mxu0 0.0
    %251 = vmatpush1.xpose.msra.mxu0 0.0
    %252 = vmatprep.subr.mxu0 0.0
    %253 = vmatpush1.xpose.msra.mxu0 0.0
    %254 = vmatprep.subr.mxu0 0.0
    %255 = vmatpush1.xpose.msra.mxu0 0.0
    %256 = vmatprep.subr.mxu0 0.0
    %257 = vmatpush1.xpose.msra.mxu0 0.0
    %258 = vmatprep.subr.mxu0 0.0
    %259 = vmatpush1.xpose.msra.mxu0 0.0
    %260 = vmatprep.mubr.f32.mxu0 0.0
    %261 = vmatmul.mubr.f32.gmra.mrb[0].mxu0 %v192
    %v262 = vpop.f32.mrb[0].mxu0
    %v263 = vadd.f32 0.0, %v262
    %v264 = vpop.f32.mrb[0].mxu0
    %265 = vdwg.mxu0
    %267 = vrot.lane.b32.xlu0 %v181, 96
    %v268 = vpop.permute.xlu0 %267
    %v269 = vsel %vm191, %v181, 0
    %v271 = vsel %vm191, %v268, 0
    %273 = vmatprep.subr.mxu0 0.0
    %274 = vmatpush1.xpose.msra.mxu0 %v271
    %275 = vmatprep.subr.mxu0 0.0
    %276 = vmatpush1.xpose.msra.mxu0 0.0
    %277 = vmatprep.subr.mxu0 0.0
    %278 = vmatpush1.xpose.msra.mxu0 0.0
    %279 = vmatprep.subr.mxu0 0.0
    %280 = vmatpush1.xpose.msra.mxu0 0.0
    %281 = vmatprep.subr.mxu0 0.0
    %282 = vmatpush1.xpose.msra.mxu0 0.0
    %283 = vmatprep.subr.mxu0 0.0
    %284 = vmatpush1.xpose.msra.mxu0 0.0
    %285 = vmatprep.subr.mxu0 0.0
    %286 = vmatpush1.xpose.msra.mxu0 0.0
    %287 = vmatprep.subr.mxu0 0.0
    %288 = vmatpush1.xpose.msra.mxu0 0.0
    %289 = vmatprep.subr.mxu0 0.0
    %290 = vmatpush1.xpose.msra.mxu0 0.0
    %291 = vmatprep.subr.mxu0 0.0
    %292 = vmatpush1.xpose.msra.mxu0 0.0
    %293 = vmatprep.subr.mxu0 0.0
    %294 = vmatpush1.xpose.msra.mxu0 0.0
    %295 = vmatprep.subr.mxu0 0.0
    %296 = vmatpush1.xpose.msra.mxu0 0.0
    %297 = vmatprep.subr.mxu0 0.0
    %298 = vmatpush1.xpose.msra.mxu0 0.0
    %299 = vmatprep.subr.mxu0 0.0
    %300 = vmatpush1.xpose.msra.mxu0 0.0
    %301 = vmatprep.subr.mxu0 0.0
    %302 = vmatpush1.xpose.msra.mxu0 0.0
    %303 = vmatprep.subr.mxu0 0.0
    %304 = vmatpush1.xpose.msra.mxu0 0.0
    %305 = vmatprep.subr.mxu0 0.0
    %306 = vmatpush1.xpose.msra.mxu0 0.0
    %307 = vmatprep.subr.mxu0 0.0
    %308 = vmatpush1.xpose.msra.mxu0 0.0
    %309 = vmatprep.subr.mxu0 0.0
    %310 = vmatpush1.xpose.msra.mxu0 0.0
    %311 = vmatprep.subr.mxu0 0.0
    %312 = vmatpush1.xpose.msra.mxu0 0.0
    %313 = vmatprep.subr.mxu0 0.0
    %314 = vmatpush1.xpose.msra.mxu0 0.0
    %315 = vmatprep.subr.mxu0 0.0
    %316 = vmatpush1.xpose.msra.mxu0 0.0
    %317 = vmatprep.subr.mxu0 0.0
    %318 = vmatpush1.xpose.msra.mxu0 0.0
    %319 = vmatprep.subr.mxu0 0.0
    %320 = vmatpush1.xpose.msra.mxu0 0.0
    %321 = vmatprep.subr.mxu0 0.0
    %322 = vmatpush1.xpose.msra.mxu0 0.0
    %323 = vmatprep.subr.mxu0 0.0
    %324 = vmatpush1.xpose.msra.mxu0 0.0
    %325 = vmatprep.subr.mxu0 0.0
    %326 = vmatpush1.xpose.msra.mxu0 0.0
    %327 = vmatprep.subr.mxu0 0.0
    %328 = vmatpush1.xpose.msra.mxu0 0.0
    %329 = vmatprep.subr.mxu0 0.0
    %330 = vmatpush1.xpose.msra.mxu0 0.0
    %331 = vmatprep.subr.mxu0 0.0
    %332 = vmatpush1.xpose.msra.mxu0 0.0
    %333 = vmatprep.subr.mxu0 0.0
    %334 = vmatpush1.xpose.msra.mxu0 0.0
    %335 = vmatprep.subr.mxu0 0.0
    %336 = vmatpush1.xpose.msra.mxu0 0.0
    %337 = vmatprep.mubr.f32.mxu0 0.0
    %338 = vmatmul.mubr.f32.gmra.mrb[0].mxu0 %v269
    %v339 = vpop.f32.mrb[0].mxu0
    %v340 = vadd.f32 0.0, %v339
    %v341 = vpop.f32.mrb[0].mxu0
    %342 = vdwg.mxu0
    %v343 = vmul.f32 %v263, 0.35355338
    %v344 = vmul.f32 %v340, 0.35355338
    %v345 = vsel %vm89, 1, 0
    %v346 = vsel %vm90, 1, 0
    %v347 = vlaneseq
    %v348 = vshrl.u32 %v347, 7
    %v349 = vsub.s32 0, %v348
    %v350 = vrot.slane %v345, %v349
    %v351 = vlaneseq
    %v352 = vshrl.u32 %v351, 7
    %v353 = vsub.s32 0, %v352
    %v354 = vrot.slane %v346, %v353
    %vm355 = vcmp.eq.s32.totalorder %v350, 1
    %vm356 = vcmp.eq.s32.totalorder %v354, 1
    %v357 = vsel %vm355, -1e+09, %v343
    %v358 = vsel %vm356, -1e+09, %v344
    %v359 = vsel %vm191, %v357, -inf
    %360 = vmax.xlane.f32.xlu0 %v359
    %v361 = vpop.xlane.xlu0 %360
    %v362 = vsel %vm191, %v358, -inf
    %363 = vmax.xlane.f32.xlu0 %v362
    %v364 = vpop.xlane.xlu0 %363
    %v365 = vsub.f32 %v357, %v361
    %v366 = vsub.f32 %v358, %v364
    %v367 = vmul.f32 %v365, 1.442695
    %v368 = vpow.pop %v367
    %v369 = vmul.f32 %v366, 1.442695
    %v370 = vpow.pop %v369
    %v371 = vsel %vm191, %v368, 0.0
    %372 = vadd.xlane.f32.xlu0 %v371
    %v373 = vpop.xlane.xlu0 %372
    %v374 = vsel %vm191, %v370, 0.0
    %375 = vadd.xlane.f32.xlu0 %v374
    %v376 = vpop.xlane.xlu0 %375
    %v377 = vrcp.pop %v373
    %v378 = vrcp.pop %v376
    %v379 = vmul.f32 %v368, %v377
    %v380 = vmul.f32 %v370, %v378
    %381 = vrot.lane.b32.xlu0 %v176, 64
    %v382 = vpop.permute.xlu0 %381
    %v385 = vsel %vm191, %v379, 0
    %387 = vmatprep.subr.mxu0 0.0
    %388 = vmatpush1.msra.mxu0 %v382
    %389 = vmatprep.subr.mxu0 0.0
    %390 = vmatpush1.msra.mxu0 0.0
    %391 = vmatprep.subr.mxu0 0.0
    %392 = vmatpush1.msra.mxu0 0.0
    %393 = vmatprep.subr.mxu0 0.0
    %394 = vmatpush1.msra.mxu0 0.0
    %395 = vmatprep.subr.mxu0 0.0
    %396 = vmatpush1.msra.mxu0 0.0
    %397 = vmatprep.subr.mxu0 0.0
    %398 = vmatpush1.msra.mxu0 0.0
    %399 = vmatprep.subr.mxu0 0.0
    %400 = vmatpush1.msra.mxu0 0.0
    %401 = vmatprep.subr.mxu0 0.0
    %402 = vmatpush1.msra.mxu0 0.0
    %403 = vmatprep.subr.mxu0 0.0
    %404 = vmatpush1.msra.mxu0 0.0
    %405 = vmatprep.subr.mxu0 0.0
    %406 = vmatpush1.msra.mxu0 0.0
    %407 = vmatprep.subr.mxu0 0.0
    %408 = vmatpush1.msra.mxu0 0.0
    %409 = vmatprep.subr.mxu0 0.0
    %410 = vmatpush1.msra.mxu0 0.0
    %411 = vmatprep.subr.mxu0 0.0
    %412 = vmatpush1.msra.mxu0 0.0
    %413 = vmatprep.subr.mxu0 0.0
    %414 = vmatpush1.msra.mxu0 0.0
    %415 = vmatprep.subr.mxu0 0.0
    %416 = vmatpush1.msra.mxu0 0.0
    %417 = vmatprep.subr.mxu0 0.0
    %418 = vmatpush1.msra.mxu0 0.0
    %419 = vmatprep.subr.mxu0 0.0
    %420 = vmatpush1.msra.mxu0 0.0
    %421 = vmatprep.subr.mxu0 0.0
    %422 = vmatpush1.msra.mxu0 0.0
    %423 = vmatprep.subr.mxu0 0.0
    %424 = vmatpush1.msra.mxu0 0.0
    %425 = vmatprep.subr.mxu0 0.0
    %426 = vmatpush1.msra.mxu0 0.0
    %427 = vmatprep.subr.mxu0 0.0
    %428 = vmatpush1.msra.mxu0 0.0
    %429 = vmatprep.subr.mxu0 0.0
    %430 = vmatpush1.msra.mxu0 0.0
    %431 = vmatprep.subr.mxu0 0.0
    %432 = vmatpush1.msra.mxu0 0.0
    %433 = vmatprep.subr.mxu0 0.0
    %434 = vmatpush1.msra.mxu0 0.0
    %435 = vmatprep.subr.mxu0 0.0
    %436 = vmatpush1.msra.mxu0 0.0
    %437 = vmatprep.subr.mxu0 0.0
    %438 = vmatpush1.msra.mxu0 0.0
    %439 = vmatprep.subr.mxu0 0.0
    %440 = vmatpush1.msra.mxu0 0.0
    %441 = vmatprep.subr.mxu0 0.0
    %442 = vmatpush1.msra.mxu0 0.0
    %443 = vmatprep.subr.mxu0 0.0
    %444 = vmatpush1.msra.mxu0 0.0
    %445 = vmatprep.subr.mxu0 0.0
    %446 = vmatpush1.msra.mxu0 0.0
    %447 = vmatprep.subr.mxu0 0.0
    %448 = vmatpush1.msra.mxu0 0.0
    %449 = vmatprep.subr.mxu0 0.0
    %450 = vmatpush1.msra.mxu0 0.0
    %451 = vmatprep.mubr.f32.mxu0 0.0
    %452 = vmatmul.mubr.f32.gmra.mrb[0].mxu0 %v385
    %v453 = vpop.f32.mrb[0].mxu0
    %v454 = vadd.f32 0.0, %v453
    %v455 = vpop.f32.mrb[0].mxu0
    %456 = vdwg.mxu0
    %457 = vrot.lane.b32.xlu0 %v181, 64
    %v458 = vpop.permute.xlu0 %457
    %v461 = vsel %vm191, %v380, 0
    %463 = vmatprep.subr.mxu0 0.0
    %464 = vmatpush1.msra.mxu0 %v458
    %465 = vmatprep.subr.mxu0 0.0
    %466 = vmatpush1.msra.mxu0 0.0
    %467 = vmatprep.subr.mxu0 0.0
    %468 = vmatpush1.msra.mxu0 0.0
    %469 = vmatprep.subr.mxu0 0.0
    %470 = vmatpush1.msra.mxu0 0.0
    %471 = vmatprep.subr.mxu0 0.0
    %472 = vmatpush1.msra.mxu0 0.0
    %473 = vmatprep.subr.mxu0 0.0
    %474 = vmatpush1.msra.mxu0 0.0
    %475 = vmatprep.subr.mxu0 0.0
    %476 = vmatpush1.msra.mxu0 0.0
    %477 = vmatprep.subr.mxu0 0.0
    %478 = vmatpush1.msra.mxu0 0.0
    %479 = vmatprep.subr.mxu0 0.0
    %480 = vmatpush1.msra.mxu0 0.0
    %481 = vmatprep.subr.mxu0 0.0
    %482 = vmatpush1.msra.mxu0 0.0
    %483 = vmatprep.subr.mxu0 0.0
    %484 = vmatpush1.msra.mxu0 0.0
    %485 = vmatprep.subr.mxu0 0.0
    %486 = vmatpush1.msra.mxu0 0.0
    %487 = vmatprep.subr.mxu0 0.0
    %488 = vmatpush1.msra.mxu0 0.0
    %489 = vmatprep.subr.mxu0 0.0
    %490 = vmatpush1.msra.mxu0 0.0
    %491 = vmatprep.subr.mxu0 0.0
    %492 = vmatpush1.msra.mxu0 0.0
    %493 = vmatprep.subr.mxu0 0.0
    %494 = vmatpush1.msra.mxu0 0.0
    %495 = vmatprep.subr.mxu0 0.0
    %496 = vmatpush1.msra.mxu0 0.0
    %497 = vmatprep.subr.mxu0 0.0
    %498 = vmatpush1.msra.mxu0 0.0
    %499 = vmatprep.subr.mxu0 0.0
    %500 = vmatpush1.msra.mxu0 0.0
    %501 = vmatprep.subr.mxu0 0.0
    %502 = vmatpush1.msra.mxu0 0.0
    %503 = vmatprep.subr.mxu0 0.0
    %504 = vmatpush1.msra.mxu0 0.0
    %505 = vmatprep.subr.mxu0 0.0
    %506 = vmatpush1.msra.mxu0 0.0
    %507 = vmatprep.subr.mxu0 0.0
    %508 = vmatpush1.msra.mxu0 0.0
    %509 = vmatprep.subr.mxu0 0.0
    %510 = vmatpush1.msra.mxu0 0.0
    %511 = vmatprep.subr.mxu0 0.0
    %512 = vmatpush1.msra.mxu0 0.0
    %513 = vmatprep.subr.mxu0 0.0
    %514 = vmatpush1.msra.mxu0 0.0
    %515 = vmatprep.subr.mxu0 0.0
    %516 = vmatpush1.msra.mxu0 0.0
    %517 = vmatprep.subr.mxu0 0.0
    %518 = vmatpush1.msra.mxu0 0.0
    %519 = vmatprep.subr.mxu0 0.0
    %520 = vmatpush1.msra.mxu0 0.0
    %521 = vmatprep.subr.mxu0 0.0
    %522 = vmatpush1.msra.mxu0 0.0
    %523 = vmatprep.subr.mxu0 0.0
    %524 = vmatpush1.msra.mxu0 0.0
    %525 = vmatprep.subr.mxu0 0.0
    %526 = vmatpush1.msra.mxu0 0.0
    %527 = vmatprep.mubr.f32.mxu0 0.0
    %528 = vmatmul.mubr.f32.gmra.mrb[0].mxu0 %v461
    %v529 = vpop.f32.mrb[0].mxu0
    %v530 = vadd.f32 0.0, %v529
    %v531 = vpop.f32.mrb[0].mxu0
    %532 = vdwg.mxu0
    %533 = vrot.lane.b32.xlu0 %v176, 120
    %v534 = vpop.permute.xlu0 %533
    %535 = vrot.lane.b32.xlu0 %v176, 88
    %v536 = vpop.permute.xlu0 %535
    %v537 = vsel %vm191, %v534, 0
    %v539 = vsel %vm191, %v536, 0
    %541 = vmatprep.subr.mxu0 0.0
    %542 = vmatpush1.xpose.msra.mxu0 %v539
    %543 = vmatprep.subr.mxu0 0.0
    %544 = vmatpush1.xpose.msra.mxu0 0.0
    %545 = vmatprep.subr.mxu0 0.0
    %546 = vmatpush1.xpose.msra.mxu0 0.0
    %547 = vmatprep.subr.mxu0 0.0
    %548 = vmatpush1.xpose.msra.mxu0 0.0
    %549 = vmatprep.subr.mxu0 0.0
    %550 = vmatpush1.xpose.msra.mxu0 0.0
    %551 = vmatprep.subr.mxu0 0.0
    %552 = vmatpush1.xpose.msra.mxu0 0.0
    %553 = vmatprep.subr.mxu0 0.0
    %554 = vmatpush1.xpose.msra.mxu0 0.0
    %555 = vmatprep.subr.mxu0 0.0
    %556 = vmatpush1.xpose.msra.mxu0 0.0
    %557 = vmatprep.subr.mxu0 0.0
    %558 = vmatpush1.xpose.msra.mxu0 0.0
    %559 = vmatprep.subr.mxu0 0.0
    %560 = vmatpush1.xpose.msra.mxu0 0.0
    %561 = vmatprep.subr.mxu0 0.0
    %562 = vmatpush1.xpose.msra.mxu0 0.0
    %563 = vmatprep.subr.mxu0 0.0
    %564 = vmatpush1.xpose.msra.mxu0 0.0
    %565 = vmatprep.subr.mxu0 0.0
    %566 = vmatpush1.xpose.msra.mxu0 0.0
    %567 = vmatprep.subr.mxu0 0.0
    %568 = vmatpush1.xpose.msra.mxu0 0.0
    %569 = vmatprep.subr.mxu0 0.0
    %570 = vmatpush1.xpose.msra.mxu0 0.0
    %571 = vmatprep.subr.mxu0 0.0
    %572 = vmatpush1.xpose.msra.mxu0 0.0
    %573 = vmatprep.subr.mxu0 0.0
    %574 = vmatpush1.xpose.msra.mxu0 0.0
    %575 = vmatprep.subr.mxu0 0.0
    %576 = vmatpush1.xpose.msra.mxu0 0.0
    %577 = vmatprep.subr.mxu0 0.0
    %578 = vmatpush1.xpose.msra.mxu0 0.0
    %579 = vmatprep.subr.mxu0 0.0
    %580 = vmatpush1.xpose.msra.mxu0 0.0
    %581 = vmatprep.subr.mxu0 0.0
    %582 = vmatpush1.xpose.msra.mxu0 0.0
    %583 = vmatprep.subr.mxu0 0.0
    %584 = vmatpush1.xpose.msra.mxu0 0.0
    %585 = vmatprep.subr.mxu0 0.0
    %586 = vmatpush1.xpose.msra.mxu0 0.0
    %587 = vmatprep.subr.mxu0 0.0
    %588 = vmatpush1.xpose.msra.mxu0 0.0
    %589 = vmatprep.subr.mxu0 0.0
    %590 = vmatpush1.xpose.msra.mxu0 0.0
    %591 = vmatprep.subr.mxu0 0.0
    %592 = vmatpush1.xpose.msra.mxu0 0.0
    %593 = vmatprep.subr.mxu0 0.0
    %594 = vmatpush1.xpose.msra.mxu0 0.0
    %595 = vmatprep.subr.mxu0 0.0
    %596 = vmatpush1.xpose.msra.mxu0 0.0
    %597 = vmatprep.subr.mxu0 0.0
    %598 = vmatpush1.xpose.msra.mxu0 0.0
    %599 = vmatprep.subr.mxu0 0.0
    %600 = vmatpush1.xpose.msra.mxu0 0.0
    %601 = vmatprep.subr.mxu0 0.0
    %602 = vmatpush1.xpose.msra.mxu0 0.0
    %603 = vmatprep.subr.mxu0 0.0
    %604 = vmatpush1.xpose.msra.mxu0 0.0
    %605 = vmatprep.mubr.f32.mxu0 0.0
    %606 = vmatmul.mubr.f32.gmra.mrb[0].mxu0 %v537
    %v607 = vpop.f32.mrb[0].mxu0
    %v608 = vadd.f32 0.0, %v607
    %v609 = vpop.f32.mrb[0].mxu0
    %610 = vdwg.mxu0
    %611 = vrot.lane.b32.xlu0 %v181, 120
    %v612 = vpop.permute.xlu0 %611
    %613 = vrot.lane.b32.xlu0 %v181, 88
    %v614 = vpop.permute.xlu0 %613
    %v615 = vsel %vm191, %v612, 0
    %v617 = vsel %vm191, %v614, 0
    %619 = vmatprep.subr.mxu0 0.0
    %620 = vmatpush1.xpose.msra.mxu0 %v617
    %621 = vmatprep.subr.mxu0 0.0
    %622 = vmatpush1.xpose.msra.mxu0 0.0
    %623 = vmatprep.subr.mxu0 0.0
    %624 = vmatpush1.xpose.msra.mxu0 0.0
    %625 = vmatprep.subr.mxu0 0.0
    %626 = vmatpush1.xpose.msra.mxu0 0.0
    %627 = vmatprep.subr.mxu0 0.0
    %628 = vmatpush1.xpose.msra.mxu0 0.0
    %629 = vmatprep.subr.mxu0 0.0
    %630 = vmatpush1.xpose.msra.mxu0 0.0
    %631 = vmatprep.subr.mxu0 0.0
    %632 = vmatpush1.xpose.msra.mxu0 0.0
    %633 = vmatprep.subr.mxu0 0.0
    %634 = vmatpush1.xpose.msra.mxu0 0.0
    %635 = vmatprep.subr.mxu0 0.0
    %636 = vmatpush1.xpose.msra.mxu0 0.0
    %637 = vmatprep.subr.mxu0 0.0
    %638 = vmatpush1.xpose.msra.mxu0 0.0
    %639 = vmatprep.subr.mxu0 0.0
    %640 = vmatpush1.xpose.msra.mxu0 0.0
    %641 = vmatprep.subr.mxu0 0.0
    %642 = vmatpush1.xpose.msra.mxu0 0.0
    %643 = vmatprep.subr.mxu0 0.0
    %644 = vmatpush1.xpose.msra.mxu0 0.0
    %645 = vmatprep.subr.mxu0 0.0
    %646 = vmatpush1.xpose.msra.mxu0 0.0
    %647 = vmatprep.subr.mxu0 0.0
    %648 = vmatpush1.xpose.msra.mxu0 0.0
    %649 = vmatprep.subr.mxu0 0.0
    %650 = vmatpush1.xpose.msra.mxu0 0.0
    %651 = vmatprep.subr.mxu0 0.0
    %652 = vmatpush1.xpose.msra.mxu0 0.0
    %653 = vmatprep.subr.mxu0 0.0
    %654 = vmatpush1.xpose.msra.mxu0 0.0
    %655 = vmatprep.subr.mxu0 0.0
    %656 = vmatpush1.xpose.msra.mxu0 0.0
    %657 = vmatprep.subr.mxu0 0.0
    %658 = vmatpush1.xpose.msra.mxu0 0.0
    %659 = vmatprep.subr.mxu0 0.0
    %660 = vmatpush1.xpose.msra.mxu0 0.0
    %661 = vmatprep.subr.mxu0 0.0
    %662 = vmatpush1.xpose.msra.mxu0 0.0
    %663 = vmatprep.subr.mxu0 0.0
    %664 = vmatpush1.xpose.msra.mxu0 0.0
    %665 = vmatprep.subr.mxu0 0.0
    %666 = vmatpush1.xpose.msra.mxu0 0.0
    %667 = vmatprep.subr.mxu0 0.0
    %668 = vmatpush1.xpose.msra.mxu0 0.0
    %669 = vmatprep.subr.mxu0 0.0
    %670 = vmatpush1.xpose.msra.mxu0 0.0
    %671 = vmatprep.subr.mxu0 0.0
    %672 = vmatpush1.xpose.msra.mxu0 0.0
    %673 = vmatprep.subr.mxu0 0.0
    %674 = vmatpush1.xpose.msra.mxu0 0.0
    %675 = vmatprep.subr.mxu0 0.0
    %676 = vmatpush1.xpose.msra.mxu0 0.0
    %677 = vmatprep.subr.mxu0 0.0
    %678 = vmatpush1.xpose.msra.mxu0 0.0
    %679 = vmatprep.subr.mxu0 0.0
    %680 = vmatpush1.xpose.msra.mxu0 0.0
    %681 = vmatprep.subr.mxu0 0.0
    %682 = vmatpush1.xpose.msra.mxu0 0.0
    %683 = vmatprep.mubr.f32.mxu0 0.0
    %684 = vmatmul.mubr.f32.gmra.mrb[0].mxu0 %v615
    %v685 = vpop.f32.mrb[0].mxu0
    %v686 = vadd.f32 0.0, %v685
    %v687 = vpop.f32.mrb[0].mxu0
    %688 = vdwg.mxu0
    %v689 = vmul.f32 %v608, 0.35355338
    %v690 = vmul.f32 %v686, 0.35355338
    %v691 = vsel %vm355, -1e+09, %v689
    %v692 = vsel %vm356, -1e+09, %v690
    %v693 = vsel %vm191, %v691, -inf
    %694 = vmax.xlane.f32.xlu0 %v693
    %v695 = vpop.xlane.xlu0 %694
    %v696 = vsel %vm191, %v692, -inf
    %697 = vmax.xlane.f32.xlu0 %v696
    %v698 = vpop.xlane.xlu0 %697
    %v699 = vsub.f32 %v691, %v695
    %v700 = vsub.f32 %v692, %v698
    %v701 = vmul.f32 %v699, 1.442695
    %v702 = vpow.pop %v701
    %v703 = vmul.f32 %v700, 1.442695
    %v704 = vpow.pop %v703
    %v705 = vsel %vm191, %v702, 0.0
    %706 = vadd.xlane.f32.xlu0 %v705
    %v707 = vpop.xlane.xlu0 %706
    %v708 = vsel %vm191, %v704, 0.0
    %709 = vadd.xlane.f32.xlu0 %v708
    %v710 = vpop.xlane.xlu0 %709
    %v711 = vrcp.pop %v707
    %v712 = vrcp.pop %v710
    %v713 = vmul.f32 %v702, %v711
    %v714 = vmul.f32 %v704, %v712
    %715 = vrot.lane.b32.xlu0 %v176, 56
    %v716 = vpop.permute.xlu0 %715
    %v719 = vsel %vm191, %v713, 0
    %721 = vmatprep.subr.mxu0 0.0
    %722 = vmatpush1.msra.mxu0 %v716
    %723 = vmatprep.subr.mxu0 0.0
    %724 = vmatpush1.msra.mxu0 0.0
    %725 = vmatprep.subr.mxu0 0.0
    %726 = vmatpush1.msra.mxu0 0.0
    %727 = vmatprep.subr.mxu0 0.0
    %728 = vmatpush1.msra.mxu0 0.0
    %729 = vmatprep.subr.mxu0 0.0
    %730 = vmatpush1.msra.mxu0 0.0
    %731 = vmatprep.subr.mxu0 0.0
    %732 = vmatpush1.msra.mxu0 0.0
    %733 = vmatprep.subr.mxu0 0.0
    %734 = vmatpush1.msra.mxu0 0.0
    %735 = vmatprep.subr.mxu0 0.0
    %736 = vmatpush1.msra.mxu0 0.0
    %737 = vmatprep.subr.mxu0 0.0
    %738 = vmatpush1.msra.mxu0 0.0
    %739 = vmatprep.subr.mxu0 0.0
    %740 = vmatpush1.msra.mxu0 0.0
    %741 = vmatprep.subr.mxu0 0.0
    %742 = vmatpush1.msra.mxu0 0.0
    %743 = vmatprep.subr.mxu0 0.0
    %744 = vmatpush1.msra.mxu0 0.0
    %745 = vmatprep.subr.mxu0 0.0
    %746 = vmatpush1.msra.mxu0 0.0
    %747 = vmatprep.subr.mxu0 0.0
    %748 = vmatpush1.msra.mxu0 0.0
    %749 = vmatprep.subr.mxu0 0.0
    %750 = vmatpush1.msra.mxu0 0.0
    %751 = vmatprep.subr.mxu0 0.0
    %752 = vmatpush1.msra.mxu0 0.0
    %753 = vmatprep.subr.mxu0 0.0
    %754 = vmatpush1.msra.mxu0 0.0
    %755 = vmatprep.subr.mxu0 0.0
    %756 = vmatpush1.msra.mxu0 0.0
    %757 = vmatprep.subr.mxu0 0.0
    %758 = vmatpush1.msra.mxu0 0.0
    %759 = vmatprep.subr.mxu0 0.0
    %760 = vmatpush1.msra.mxu0 0.0
    %761 = vmatprep.subr.mxu0 0.0
    %762 = vmatpush1.msra.mxu0 0.0
    %763 = vmatprep.subr.mxu0 0.0
    %764 = vmatpush1.msra.mxu0 0.0
    %765 = vmatprep.subr.mxu0 0.0
    %766 = vmatpush1.msra.mxu0 0.0
    %767 = vmatprep.subr.mxu0 0.0
    %768 = vmatpush1.msra.mxu0 0.0
    %769 = vmatprep.subr.mxu0 0.0
    %770 = vmatpush1.msra.mxu0 0.0
    %771 = vmatprep.subr.mxu0 0.0
    %772 = vmatpush1.msra.mxu0 0.0
    %773 = vmatprep.subr.mxu0 0.0
    %774 = vmatpush1.msra.mxu0 0.0
    %775 = vmatprep.subr.mxu0 0.0
    %776 = vmatpush1.msra.mxu0 0.0
    %777 = vmatprep.subr.mxu0 0.0
    %778 = vmatpush1.msra.mxu0 0.0
    %779 = vmatprep.subr.mxu0 0.0
    %780 = vmatpush1.msra.mxu0 0.0
    %781 = vmatprep.subr.mxu0 0.0
    %782 = vmatpush1.msra.mxu0 0.0
    %783 = vmatprep.subr.mxu0 0.0
    %784 = vmatpush1.msra.mxu0 0.0
    %785 = vmatprep.mubr.f32.mxu0 0.0
    %786 = vmatmul.mubr.f32.gmra.mrb[0].mxu0 %v719
    %v787 = vpop.f32.mrb[0].mxu0
    %v788 = vadd.f32 0.0, %v787
    %v789 = vpop.f32.mrb[0].mxu0
    %790 = vdwg.mxu0
    %791 = vrot.lane.b32.xlu0 %v181, 56
    %v792 = vpop.permute.xlu0 %791
    %v795 = vsel %vm191, %v714, 0
    %797 = vmatprep.subr.mxu0 0.0
    %798 = vmatpush1.msra.mxu0 %v792
    %799 = vmatprep.subr.mxu0 0.0
    %800 = vmatpush1.msra.mxu0 0.0
    %801 = vmatprep.subr.mxu0 0.0
    %802 = vmatpush1.msra.mxu0 0.0
    %803 = vmatprep.subr.mxu0 0.0
    %804 = vmatpush1.msra.mxu0 0.0
    %805 = vmatprep.subr.mxu0 0.0
    %806 = vmatpush1.msra.mxu0 0.0
    %807 = vmatprep.subr.mxu0 0.0
    %808 = vmatpush1.msra.mxu0 0.0
    %809 = vmatprep.subr.mxu0 0.0
    %810 = vmatpush1.msra.mxu0 0.0
    %811 = vmatprep.subr.mxu0 0.0
    %812 = vmatpush1.msra.mxu0 0.0
    %813 = vmatprep.subr.mxu0 0.0
    %814 = vmatpush1.msra.mxu0 0.0
    %815 = vmatprep.subr.mxu0 0.0
    %816 = vmatpush1.msra.mxu0 0.0
    %817 = vmatprep.subr.mxu0 0.0
    %818 = vmatpush1.msra.mxu0 0.0
    %819 = vmatprep.subr.mxu0 0.0
    %820 = vmatpush1.msra.mxu0 0.0
    %821 = vmatprep.subr.mxu0 0.0
    %822 = vmatpush1.msra.mxu0 0.0
    %823 = vmatprep.subr.mxu0 0.0
    %824 = vmatpush1.msra.mxu0 0.0
    %825 = vmatprep.subr.mxu0 0.0
    %826 = vmatpush1.msra.mxu0 0.0
    %827 = vmatprep.subr.mxu0 0.0
    %828 = vmatpush1.msra.mxu0 0.0
    %829 = vmatprep.subr.mxu0 0.0
    %830 = vmatpush1.msra.mxu0 0.0
    %831 = vmatprep.subr.mxu0 0.0
    %832 = vmatpush1.msra.mxu0 0.0
    %833 = vmatprep.subr.mxu0 0.0
    %834 = vmatpush1.msra.mxu0 0.0
    %835 = vmatprep.subr.mxu0 0.0
    %836 = vmatpush1.msra.mxu0 0.0
    %837 = vmatprep.subr.mxu0 0.0
    %838 = vmatpush1.msra.mxu0 0.0
    %839 = vmatprep.subr.mxu0 0.0
    %840 = vmatpush1.msra.mxu0 0.0
    %841 = vmatprep.subr.mxu0 0.0
    %842 = vmatpush1.msra.mxu0 0.0
    %843 = vmatprep.subr.mxu0 0.0
    %844 = vmatpush1.msra.mxu0 0.0
    %845 = vmatprep.subr.mxu0 0.0
    %846 = vmatpush1.msra.mxu0 0.0
    %847 = vmatprep.subr.mxu0 0.0
    %848 = vmatpush1.msra.mxu0 0.0
    %849 = vmatprep.subr.mxu0 0.0
    %850 = vmatpush1.msra.mxu0 0.0
    %851 = vmatprep.subr.mxu0 0.0
    %852 = vmatpush1.msra.mxu0 0.0
    %853 = vmatprep.subr.mxu0 0.0
    %854 = vmatpush1.msra.mxu0 0.0
    %855 = vmatprep.subr.mxu0 0.0
    %856 = vmatpush1.msra.mxu0 0.0
    %857 = vmatprep.subr.mxu0 0.0
    %858 = vmatpush1.msra.mxu0 0.0
    %859 = vmatprep.subr.mxu0 0.0
    %860 = vmatpush1.msra.mxu0 0.0
    %861 = vmatprep.mubr.f32.mxu0 0.0
    %862 = vmatmul.mubr.f32.gmra.mrb[0].mxu0 %v795
    %v863 = vpop.f32.mrb[0].mxu0
    %v864 = vadd.f32 0.0, %v863
    %v865 = vpop.f32.mrb[0].mxu0
    %866 = vdwg.mxu0
    %v868 = vsel %vm191, %v788, 0
    %v871 = vsel %vm191, %v864, 0
    %873 = vmatprep.subr.mxu0 0.0
    %874 = vmatpush1.msra.mxu0 %v185
    %875 = vmatprep.subr.mxu0 0.0
    %876 = vmatpush1.msra.mxu0 0.0
    %877 = vmatprep.subr.mxu0 0.0
    %878 = vmatpush1.msra.mxu0 0.0
    %879 = vmatprep.subr.mxu0 0.0
    %880 = vmatpush1.msra.mxu0 0.0
    %881 = vmatprep.subr.mxu0 0.0
    %882 = vmatpush1.msra.mxu0 0.0
    %883 = vmatprep.subr.mxu0 0.0
    %884 = vmatpush1.msra.mxu0 0.0
    %885 = vmatprep.subr.mxu0 0.0
    %886 = vmatpush1.msra.mxu0 0.0
    %887 = vmatprep.subr.mxu0 0.0
    %888 = vmatpush1.msra.mxu0 0.0
    %889 = vmatprep.subr.mxu0 0.0
    %890 = vmatpush1.msra.mxu0 0.0
    %891 = vmatprep.subr.mxu0 0.0
    %892 = vmatpush1.msra.mxu0 0.0
    %893 = vmatprep.subr.mxu0 0.0
    %894 = vmatpush1.msra.mxu0 0.0
    %895 = vmatprep.subr.mxu0 0.0
    %896 = vmatpush1.msra.mxu0 0.0
    %897 = vmatprep.subr.mxu0 0.0
    %898 = vmatpush1.msra.mxu0 0.0
    %899 = vmatprep.subr.mxu0 0.0
    %900 = vmatpush1.msra.mxu0 0.0
    %901 = vmatprep.subr.mxu0 0.0
    %902 = vmatpush1.msra.mxu0 0.0
    %903 = vmatprep.subr.mxu0 0.0
    %904 = vmatpush1.msra.mxu0 0.0
    %905 = vmatprep.subr.mxu0 0.0
    %906 = vmatpush1.msra.mxu0 0.0
    %907 = vmatprep.subr.mxu0 0.0
    %908 = vmatpush1.msra.mxu0 0.0
    %909 = vmatprep.subr.mxu0 0.0
    %910 = vmatpush1.msra.mxu0 0.0
    %911 = vmatprep.subr.mxu0 0.0
    %912 = vmatpush1.msra.mxu0 0.0
    %913 = vmatprep.subr.mxu0 0.0
    %914 = vmatpush1.msra.mxu0 0.0
    %915 = vmatprep.subr.mxu0 0.0
    %916 = vmatpush1.msra.mxu0 0.0
    %917 = vmatprep.subr.mxu0 0.0
    %918 = vmatpush1.msra.mxu0 0.0
    %919 = vmatprep.subr.mxu0 0.0
    %920 = vmatpush1.msra.mxu0 0.0
    %921 = vmatprep.subr.mxu0 0.0
    %922 = vmatpush1.msra.mxu0 0.0
    %923 = vmatprep.subr.mxu0 0.0
    %924 = vmatpush1.msra.mxu0 0.0
    %925 = vmatprep.subr.mxu0 0.0
    %926 = vmatpush1.msra.mxu0 0.0
    %927 = vmatprep.subr.mxu0 0.0
    %928 = vmatpush1.msra.mxu0 0.0
    %929 = vmatprep.subr.mxu0 0.0
    %930 = vmatpush1.msra.mxu0 0.0
    %931 = vmatprep.subr.mxu0 0.0
    %932 = vmatpush1.msra.mxu0 0.0
    %933 = vmatprep.subr.mxu0 0.0
    %934 = vmatpush1.msra.mxu0 0.0
    %935 = vmatprep.subr.mxu0 0.0
    %936 = vmatpush1.msra.mxu0 0.0
    %937 = vmatprep.mubr.f32.mxu0 0.0
    %938 = vmatmul.mubr.f32.gmra.mrb[0].mxu0 %v868
    %v939 = vpop.f32.mrb[0].mxu0
    %v940 = vadd.f32 0.0, %v939
    %v941 = vpop.f32.mrb[0].mxu0
    %942 = vmatprep.mubr.f32.mxu0 0.0
    %943 = vmatmul.mubr.f32.gmra.mrb[0].mxu0 %v871
    %v944 = vpop.f32.mrb[0].mxu0
    %v945 = vadd.f32 0.0, %v944
    %v946 = vpop.f32.mrb[0].mxu0
    %947 = vdwg.mxu0
    %v949 = vsel %vm191, %v454, 0
    %v952 = vsel %vm191, %v530, 0
    %954 = vmatprep.subr.mxu0 0.0
    %955 = vmatpush1.msra.mxu0 %v184
    %956 = vmatprep.subr.mxu0 0.0
    %957 = vmatpush1.msra.mxu0 0.0
    %958 = vmatprep.subr.mxu0 0.0
    %959 = vmatpush1.msra.mxu0 0.0
    %960 = vmatprep.subr.mxu0 0.0
    %961 = vmatpush1.msra.mxu0 0.0
    %962 = vmatprep.subr.mxu0 0.0
    %963 = vmatpush1.msra.mxu0 0.0
    %964 = vmatprep.subr.mxu0 0.0
    %965 = vmatpush1.msra.mxu0 0.0
    %966 = vmatprep.subr.mxu0 0.0
    %967 = vmatpush1.msra.mxu0 0.0
    %968 = vmatprep.subr.mxu0 0.0
    %969 = vmatpush1.msra.mxu0 0.0
    %970 = vmatprep.subr.mxu0 0.0
    %971 = vmatpush1.msra.mxu0 0.0
    %972 = vmatprep.subr.mxu0 0.0
    %973 = vmatpush1.msra.mxu0 0.0
    %974 = vmatprep.subr.mxu0 0.0
    %975 = vmatpush1.msra.mxu0 0.0
    %976 = vmatprep.subr.mxu0 0.0
    %977 = vmatpush1.msra.mxu0 0.0
    %978 = vmatprep.subr.mxu0 0.0
    %979 = vmatpush1.msra.mxu0 0.0
    %980 = vmatprep.subr.mxu0 0.0
    %981 = vmatpush1.msra.mxu0 0.0
    %982 = vmatprep.subr.mxu0 0.0
    %983 = vmatpush1.msra.mxu0 0.0
    %984 = vmatprep.subr.mxu0 0.0
    %985 = vmatpush1.msra.mxu0 0.0
    %986 = vmatprep.subr.mxu0 0.0
    %987 = vmatpush1.msra.mxu0 0.0
    %988 = vmatprep.subr.mxu0 0.0
    %989 = vmatpush1.msra.mxu0 0.0
    %990 = vmatprep.subr.mxu0 0.0
    %991 = vmatpush1.msra.mxu0 0.0
    %992 = vmatprep.subr.mxu0 0.0
    %993 = vmatpush1.msra.mxu0 0.0
    %994 = vmatprep.subr.mxu0 0.0
    %995 = vmatpush1.msra.mxu0 0.0
    %996 = vmatprep.subr.mxu0 0.0
    %997 = vmatpush1.msra.mxu0 0.0
    %998 = vmatprep.subr.mxu0 0.0
    %999 = vmatpush1.msra.mxu0 0.0
    %1000 = vmatprep.subr.mxu0 0.0
    %1001 = vmatpush1.msra.mxu0 0.0
    %1002 = vmatprep.subr.mxu0 0.0
    %1003 = vmatpush1.msra.mxu0 0.0
    %1004 = vmatprep.subr.mxu0 0.0
    %1005 = vmatpush1.msra.mxu0 0.0
    %1006 = vmatprep.subr.mxu0 0.0
    %1007 = vmatpush1.msra.mxu0 0.0
    %1008 = vmatprep.subr.mxu0 0.0
    %1009 = vmatpush1.msra.mxu0 0.0
    %1010 = vmatprep.subr.mxu0 0.0
    %1011 = vmatpush1.msra.mxu0 0.0
    %1012 = vmatprep.subr.mxu0 0.0
    %1013 = vmatpush1.msra.mxu0 0.0
    %1014 = vmatprep.subr.mxu0 0.0
    %1015 = vmatpush1.msra.mxu0 0.0
    %1016 = vmatprep.subr.mxu0 0.0
    %1017 = vmatpush1.msra.mxu0 0.0
    %1018 = vmatprep.mubr.f32.mxu0 0.0
    %1019 = vmatmul.mubr.f32.gmra.mrb[0].mxu0 %v949
    %v1020 = vpop.f32.mrb[0].mxu0
    %v1021 = vadd.f32 %v940, %v1020
    %v1022 = vpop.f32.mrb[0].mxu0
    %1023 = vmatprep.mubr.f32.mxu0 0.0
    %1024 = vmatmul.mubr.f32.gmra.mrb[0].mxu0 %v952
    %v1025 = vpop.f32.mrb[0].mxu0
    %v1026 = vadd.f32 %v945, %v1025
    %v1027 = vpop.f32.mrb[0].mxu0
    %1028 = vdwg.mxu0
    %1029 = vrot.lane.b32.xlu0 %v176, 112
    %v1030 = vpop.permute.xlu0 %1029
    %1031 = vrot.lane.b32.xlu0 %v176, 80
    %v1032 = vpop.permute.xlu0 %1031
    %v1033 = vsel %vm191, %v1030, 0
    %v1035 = vsel %vm191, %v1032, 0
    %1037 = vmatprep.subr.mxu0 0.0
    %1038 = vmatpush1.xpose.msra.mxu0 %v1035
    %1039 = vmatprep.subr.mxu0 0.0
    %1040 = vmatpush1.xpose.msra.mxu0 0.0
    %1041 = vmatprep.subr.mxu0 0.0
    %1042 = vmatpush1.xpose.msra.mxu0 0.0
    %1043 = vmatprep.subr.mxu0 0.0
    %1044 = vmatpush1.xpose.msra.mxu0 0.0
    %1045 = vmatprep.subr.mxu0 0.0
    %1046 = vmatpush1.xpose.msra.mxu0 0.0
    %1047 = vmatprep.subr.mxu0 0.0
    %1048 = vmatpush1.xpose.msra.mxu0 0.0
    %1049 = vmatprep.subr.mxu0 0.0
    %1050 = vmatpush1.xpose.msra.mxu0 0.0
    %1051 = vmatprep.subr.mxu0 0.0
    %1052 = vmatpush1.xpose.msra.mxu0 0.0
    %1053 = vmatprep.subr.mxu0 0.0
    %1054 = vmatpush1.xpose.msra.mxu0 0.0
    %1055 = vmatprep.subr.mxu0 0.0
    %1056 = vmatpush1.xpose.msra.mxu0 0.0
    %1057 = vmatprep.subr.mxu0 0.0
    %1058 = vmatpush1.xpose.msra.mxu0 0.0
    %1059 = vmatprep.subr.mxu0 0.0
    %1060 = vmatpush1.xpose.msra.mxu0 0.0
    %1061 = vmatprep.subr.mxu0 0.0
    %1062 = vmatpush1.xpose.msra.mxu0 0.0
    %1063 = vmatprep.subr.mxu0 0.0
    %1064 = vmatpush1.xpose.msra.mxu0 0.0
    %1065 = vmatprep.subr.mxu0 0.0
    %1066 = vmatpush1.xpose.msra.mxu0 0.0
    %1067 = vmatprep.subr.mxu0 0.0
    %1068 = vmatpush1.xpose.msra.mxu0 0.0
    %1069 = vmatprep.subr.mxu0 0.0
    %1070 = vmatpush1.xpose.msra.mxu0 0.0
    %1071 = vmatprep.subr.mxu0 0.0
    %1072 = vmatpush1.xpose.msra.mxu0 0.0
    %1073 = vmatprep.subr.mxu0 0.0
    %1074 = vmatpush1.xpose.msra.mxu0 0.0
    %1075 = vmatprep.subr.mxu0 0.0
    %1076 = vmatpush1.xpose.msra.mxu0 0.0
    %1077 = vmatprep.subr.mxu0 0.0
    %1078 = vmatpush1.xpose.msra.mxu0 0.0
    %1079 = vmatprep.subr.mxu0 0.0
    %1080 = vmatpush1.xpose.msra.mxu0 0.0
    %1081 = vmatprep.subr.mxu0 0.0
    %1082 = vmatpush1.xpose.msra.mxu0 0.0
    %1083 = vmatprep.subr.mxu0 0.0
    %1084 = vmatpush1.xpose.msra.mxu0 0.0
    %1085 = vmatprep.subr.mxu0 0.0
    %1086 = vmatpush1.xpose.msra.mxu0 0.0
    %1087 = vmatprep.subr.mxu0 0.0
    %1088 = vmatpush1.xpose.msra.mxu0 0.0
    %1089 = vmatprep.subr.mxu0 0.0
    %1090 = vmatpush1.xpose.msra.mxu0 0.0
    %1091 = vmatprep.subr.mxu0 0.0
    %1092 = vmatpush1.xpose.msra.mxu0 0.0
    %1093 = vmatprep.subr.mxu0 0.0
    %1094 = vmatpush1.xpose.msra.mxu0 0.0
    %1095 = vmatprep.subr.mxu0 0.0
    %1096 = vmatpush1.xpose.msra.mxu0 0.0
    %1097 = vmatprep.subr.mxu0 0.0
    %1098 = vmatpush1.xpose.msra.mxu0 0.0
    %1099 = vmatprep.subr.mxu0 0.0
    %1100 = vmatpush1.xpose.msra.mxu0 0.0
    %1101 = vmatprep.mubr.f32.mxu0 0.0
    %1102 = vmatmul.mubr.f32.gmra.mrb[0].mxu0 %v1033
    %v1103 = vpop.f32.mrb[0].mxu0
    %v1104 = vadd.f32 0.0, %v1103
    %v1105 = vpop.f32.mrb[0].mxu0
    %1106 = vdwg.mxu0
    %1107 = vrot.lane.b32.xlu0 %v181, 112
    %v1108 = vpop.permute.xlu0 %1107
    %1109 = vrot.lane.b32.xlu0 %v181, 80
    %v1110 = vpop.permute.xlu0 %1109
    %v1111 = vsel %vm191, %v1108, 0
    %v1113 = vsel %vm191, %v1110, 0
    %1115 = vmatprep.subr.mxu0 0.0
    %1116 = vmatpush1.xpose.msra.mxu0 %v1113
    %1117 = vmatprep.subr.mxu0 0.0
    %1118 = vmatpush1.xpose.msra.mxu0 0.0
    %1119 = vmatprep.subr.mxu0 0.0
    %1120 = vmatpush1.xpose.msra.mxu0 0.0
    %1121 = vmatprep.subr.mxu0 0.0
    %1122 = vmatpush1.xpose.msra.mxu0 0.0
    %1123 = vmatprep.subr.mxu0 0.0
    %1124 = vmatpush1.xpose.msra.mxu0 0.0
    %1125 = vmatprep.subr.mxu0 0.0
    %1126 = vmatpush1.xpose.msra.mxu0 0.0
    %1127 = vmatprep.subr.mxu0 0.0
    %1128 = vmatpush1.xpose.msra.mxu0 0.0
    %1129 = vmatprep.subr.mxu0 0.0
    %1130 = vmatpush1.xpose.msra.mxu0 0.0
    %1131 = vmatprep.subr.mxu0 0.0
    %1132 = vmatpush1.xpose.msra.mxu0 0.0
    %1133 = vmatprep.subr.mxu0 0.0
    %1134 = vmatpush1.xpose.msra.mxu0 0.0
    %1135 = vmatprep.subr.mxu0 0.0
    %1136 = vmatpush1.xpose.msra.mxu0 0.0
    %1137 = vmatprep.subr.mxu0 0.0
    %1138 = vmatpush1.xpose.msra.mxu0 0.0
    %1139 = vmatprep.subr.mxu0 0.0
    %1140 = vmatpush1.xpose.msra.mxu0 0.0
    %1141 = vmatprep.subr.mxu0 0.0
    %1142 = vmatpush1.xpose.msra.mxu0 0.0
    %1143 = vmatprep.subr.mxu0 0.0
    %1144 = vmatpush1.xpose.msra.mxu0 0.0
    %1145 = vmatprep.subr.mxu0 0.0
    %1146 = vmatpush1.xpose.msra.mxu0 0.0
    %1147 = vmatprep.subr.mxu0 0.0
    %1148 = vmatpush1.xpose.msra.mxu0 0.0
    %1149 = vmatprep.subr.mxu0 0.0
    %1150 = vmatpush1.xpose.msra.mxu0 0.0
    %1151 = vmatprep.subr.mxu0 0.0
    %1152 = vmatpush1.xpose.msra.mxu0 0.0
    %1153 = vmatprep.subr.mxu0 0.0
    %1154 = vmatpush1.xpose.msra.mxu0 0.0
    %1155 = vmatprep.subr.mxu0 0.0
    %1156 = vmatpush1.xpose.msra.mxu0 0.0
    %1157 = vmatprep.subr.mxu0 0.0
    %1158 = vmatpush1.xpose.msra.mxu0 0.0
    %1159 = vmatprep.subr.mxu0 0.0
    %1160 = vmatpush1.xpose.msra.mxu0 0.0
    %1161 = vmatprep.subr.mxu0 0.0
    %1162 = vmatpush1.xpose.msra.mxu0 0.0
    %1163 = vmatprep.subr.mxu0 0.0
    %1164 = vmatpush1.xpose.msra.mxu0 0.0
    %1165 = vmatprep.subr.mxu0 0.0
    %1166 = vmatpush1.xpose.msra.mxu0 0.0
    %1167 = vmatprep.subr.mxu0 0.0
    %1168 = vmatpush1.xpose.msra.mxu0 0.0
    %1169 = vmatprep.subr.mxu0 0.0
    %1170 = vmatpush1.xpose.msra.mxu0 0.0
    %1171 = vmatprep.subr.mxu0 0.0
    %1172 = vmatpush1.xpose.msra.mxu0 0.0
    %1173 = vmatprep.subr.mxu0 0.0
    %1174 = vmatpush1.xpose.msra.mxu0 0.0
    %1175 = vmatprep.subr.mxu0 0.0
    %1176 = vmatpush1.xpose.msra.mxu0 0.0
    %1177 = vmatprep.subr.mxu0 0.0
    %1178 = vmatpush1.xpose.msra.mxu0 0.0
    %1179 = vmatprep.mubr.f32.mxu0 0.0
    %1180 = vmatmul.mubr.f32.gmra.mrb[0].mxu0 %v1111
    %v1181 = vpop.f32.mrb[0].mxu0
    %v1182 = vadd.f32 0.0, %v1181
    %v1183 = vpop.f32.mrb[0].mxu0
    %1184 = vdwg.mxu0
    %v1185 = vmul.f32 %v1104, 0.35355338
    %v1186 = vmul.f32 %v1182, 0.35355338
    %v1187 = vsel %vm355, -1e+09, %v1185
    %v1188 = vsel %vm356, -1e+09, %v1186
    %v1189 = vsel %vm191, %v1187, -inf
    %1190 = vmax.xlane.f32.xlu0 %v1189
    %v1191 = vpop.xlane.xlu0 %1190
    %v1192 = vsel %vm191, %v1188, -inf
    %1193 = vmax.xlane.f32.xlu0 %v1192
    %v1194 = vpop.xlane.xlu0 %1193
    %v1195 = vsub.f32 %v1187, %v1191
    %v1196 = vsub.f32 %v1188, %v1194
    %v1197 = vmul.f32 %v1195, 1.442695
    %v1198 = vpow.pop %v1197
    %v1199 = vmul.f32 %v1196, 1.442695
    %v1200 = vpow.pop %v1199
    %v1201 = vsel %vm191, %v1198, 0.0
    %1202 = vadd.xlane.f32.xlu0 %v1201
    %v1203 = vpop.xlane.xlu0 %1202
    %v1204 = vsel %vm191, %v1200, 0.0
    %1205 = vadd.xlane.f32.xlu0 %v1204
    %v1206 = vpop.xlane.xlu0 %1205
    %v1207 = vrcp.pop %v1203
    %v1208 = vrcp.pop %v1206
    %v1209 = vmul.f32 %v1198, %v1207
    %v1210 = vmul.f32 %v1200, %v1208
    %1211 = vrot.lane.b32.xlu0 %v176, 48
    %v1212 = vpop.permute.xlu0 %1211
    %v1215 = vsel %vm191, %v1209, 0
    %1217 = vmatprep.subr.mxu0 0.0
    %1218 = vmatpush1.msra.mxu0 %v1212
    %1219 = vmatprep.subr.mxu0 0.0
    %1220 = vmatpush1.msra.mxu0 0.0
    %1221 = vmatprep.subr.mxu0 0.0
    %1222 = vmatpush1.msra.mxu0 0.0
    %1223 = vmatprep.subr.mxu0 0.0
    %1224 = vmatpush1.msra.mxu0 0.0
    %1225 = vmatprep.subr.mxu0 0.0
    %1226 = vmatpush1.msra.mxu0 0.0
    %1227 = vmatprep.subr.mxu0 0.0
    %1228 = vmatpush1.msra.mxu0 0.0
    %1229 = vmatprep.subr.mxu0 0.0
    %1230 = vmatpush1.msra.mxu0 0.0
    %1231 = vmatprep.subr.mxu0 0.0
    %1232 = vmatpush1.msra.mxu0 0.0
    %1233 = vmatprep.subr.mxu0 0.0
    %1234 = vmatpush1.msra.mxu0 0.0
    %1235 = vmatprep.subr.mxu0 0.0
    %1236 = vmatpush1.msra.mxu0 0.0
    %1237 = vmatprep.subr.mxu0 0.0
    %1238 = vmatpush1.msra.mxu0 0.0
    %1239 = vmatprep.subr.mxu0 0.0
    %1240 = vmatpush1.msra.mxu0 0.0
    %1241 = vmatprep.subr.mxu0 0.0
    %1242 = vmatpush1.msra.mxu0 0.0
    %1243 = vmatprep.subr.mxu0 0.0
    %1244 = vmatpush1.msra.mxu0 0.0
    %1245 = vmatprep.subr.mxu0 0.0
    %1246 = vmatpush1.msra.mxu0 0.0
    %1247 = vmatprep.subr.mxu0 0.0
    %1248 = vmatpush1.msra.mxu0 0.0
    %1249 = vmatprep.subr.mxu0 0.0
    %1250 = vmatpush1.msra.mxu0 0.0
    %1251 = vmatprep.subr.mxu0 0.0
    %1252 = vmatpush1.msra.mxu0 0.0
    %1253 = vmatprep.subr.mxu0 0.0
    %1254 = vmatpush1.msra.mxu0 0.0
    %1255 = vmatprep.subr.mxu0 0.0
    %1256 = vmatpush1.msra.mxu0 0.0
    %1257 = vmatprep.subr.mxu0 0.0
    %1258 = vmatpush1.msra.mxu0 0.0
    %1259 = vmatprep.subr.mxu0 0.0
    %1260 = vmatpush1.msra.mxu0 0.0
    %1261 = vmatprep.subr.mxu0 0.0
    %1262 = vmatpush1.msra.mxu0 0.0
    %1263 = vmatprep.subr.mxu0 0.0
    %1264 = vmatpush1.msra.mxu0 0.0
    %1265 = vmatprep.subr.mxu0 0.0
    %1266 = vmatpush1.msra.mxu0 0.0
    %1267 = vmatprep.subr.mxu0 0.0
    %1268 = vmatpush1.msra.mxu0 0.0
    %1269 = vmatprep.subr.mxu0 0.0
    %1270 = vmatpush1.msra.mxu0 0.0
    %1271 = vmatprep.subr.mxu0 0.0
    %1272 = vmatpush1.msra.mxu0 0.0
    %1273 = vmatprep.subr.mxu0 0.0
    %1274 = vmatpush1.msra.mxu0 0.0
    %1275 = vmatprep.subr.mxu0 0.0
    %1276 = vmatpush1.msra.mxu0 0.0
    %1277 = vmatprep.subr.mxu0 0.0
    %1278 = vmatpush1.msra.mxu0 0.0
    %1279 = vmatprep.subr.mxu0 0.0
    %1280 = vmatpush1.msra.mxu0 0.0
    %1281 = vmatprep.mubr.f32.mxu0 0.0
    %1282 = vmatmul.mubr.f32.gmra.mrb[0].mxu0 %v1215
    %v1283 = vpop.f32.mrb[0].mxu0
    %v1284 = vadd.f32 0.0, %v1283
    %v1285 = vpop.f32.mrb[0].mxu0
    %1286 = vdwg.mxu0
    %1287 = vrot.lane.b32.xlu0 %v181, 48
    %v1288 = vpop.permute.xlu0 %1287
    %v1291 = vsel %vm191, %v1210, 0
    %1293 = vmatprep.subr.mxu0 0.0
    %1294 = vmatpush1.msra.mxu0 %v1288
    %1295 = vmatprep.subr.mxu0 0.0
    %1296 = vmatpush1.msra.mxu0 0.0
    %1297 = vmatprep.subr.mxu0 0.0
    %1298 = vmatpush1.msra.mxu0 0.0
    %1299 = vmatprep.subr.mxu0 0.0
    %1300 = vmatpush1.msra.mxu0 0.0
    %1301 = vmatprep.subr.mxu0 0.0
    %1302 = vmatpush1.msra.mxu0 0.0
    %1303 = vmatprep.subr.mxu0 0.0
    %1304 = vmatpush1.msra.mxu0 0.0
    %1305 = vmatprep.subr.mxu0 0.0
    %1306 = vmatpush1.msra.mxu0 0.0
    %1307 = vmatprep.subr.mxu0 0.0
    %1308 = vmatpush1.msra.mxu0 0.0
    %1309 = vmatprep.subr.mxu0 0.0
    %1310 = vmatpush1.msra.mxu0 0.0
    %1311 = vmatprep.subr.mxu0 0.0
    %1312 = vmatpush1.msra.mxu0 0.0
    %1313 = vmatprep.subr.mxu0 0.0
    %1314 = vmatpush1.msra.mxu0 0.0
    %1315 = vmatprep.subr.mxu0 0.0
    %1316 = vmatpush1.msra.mxu0 0.0
    %1317 = vmatprep.subr.mxu0 0.0
    %1318 = vmatpush1.msra.mxu0 0.0
    %1319 = vmatprep.subr.mxu0 0.0
    %1320 = vmatpush1.msra.mxu0 0.0
    %1321 = vmatprep.subr.mxu0 0.0
    %1322 = vmatpush1.msra.mxu0 0.0
    %1323 = vmatprep.subr.mxu0 0.0
    %1324 = vmatpush1.msra.mxu0 0.0
    %1325 = vmatprep.subr.mxu0 0.0
    %1326 = vmatpush1.msra.mxu0 0.0
    %1327 = vmatprep.subr.mxu0 0.0
    %1328 = vmatpush1.msra.mxu0 0.0
    %1329 = vmatprep.subr.mxu0 0.0
    %1330 = vmatpush1.msra.mxu0 0.0
    %1331 = vmatprep.subr.mxu0 0.0
    %1332 = vmatpush1.msra.mxu0 0.0
    %1333 = vmatprep.subr.mxu0 0.0
    %1334 = vmatpush1.msra.mxu0 0.0
    %1335 = vmatprep.subr.mxu0 0.0
    %1336 = vmatpush1.msra.mxu0 0.0
    %1337 = vmatprep.subr.mxu0 0.0
    %1338 = vmatpush1.msra.mxu0 0.0
    %1339 = vmatprep.subr.mxu0 0.0
    %1340 = vmatpush1.msra.mxu0 0.0
    %1341 = vmatprep.subr.mxu0 0.0
    %1342 = vmatpush1.msra.mxu0 0.0
    %1343 = vmatprep.subr.mxu0 0.0
    %1344 = vmatpush1.msra.mxu0 0.0
    %1345 = vmatprep.subr.mxu0 0.0
    %1346 = vmatpush1.msra.mxu0 0.0
    %1347 = vmatprep.subr.mxu0 0.0
    %1348 = vmatpush1.msra.mxu0 0.0
    %1349 = vmatprep.subr.mxu0 0.0
    %1350 = vmatpush1.msra.mxu0 0.0
    %1351 = vmatprep.subr.mxu0 0.0
    %1352 = vmatpush1.msra.mxu0 0.0
    %1353 = vmatprep.subr.mxu0 0.0
    %1354 = vmatpush1.msra.mxu0 0.0
    %1355 = vmatprep.subr.mxu0 0.0
    %1356 = vmatpush1.msra.mxu0 0.0
    %1357 = vmatprep.mubr.f32.mxu0 0.0
    %1358 = vmatmul.mubr.f32.gmra.mrb[0].mxu0 %v1291
    %v1359 = vpop.f32.mrb[0].mxu0
    %v1360 = vadd.f32 0.0, %v1359
    %v1361 = vpop.f32.mrb[0].mxu0
    %1362 = vdwg.mxu0
    %v1364 = vsel %vm191, %v1284, 0
    %v1367 = vsel %vm191, %v1360, 0
    %1369 = vmatprep.subr.mxu0 0.0
    %1370 = vmatpush1.msra.mxu0 %v186
    %1371 = vmatprep.subr.mxu0 0.0
    %1372 = vmatpush1.msra.mxu0 0.0
    %1373 = vmatprep.subr.mxu0 0.0
    %1374 = vmatpush1.msra.mxu0 0.0
    %1375 = vmatprep.subr.mxu0 0.0
    %1376 = vmatpush1.msra.mxu0 0.0
    %1377 = vmatprep.subr.mxu0 0.0
    %1378 = vmatpush1.msra.mxu0 0.0
    %1379 = vmatprep.subr.mxu0 0.0
    %1380 = vmatpush1.msra.mxu0 0.0
    %1381 = vmatprep.subr.mxu0 0.0
    %1382 = vmatpush1.msra.mxu0 0.0
    %1383 = vmatprep.subr.mxu0 0.0
    %1384 = vmatpush1.msra.mxu0 0.0
    %1385 = vmatprep.subr.mxu0 0.0
    %1386 = vmatpush1.msra.mxu0 0.0
    %1387 = vmatprep.subr.mxu0 0.0
    %1388 = vmatpush1.msra.mxu0 0.0
    %1389 = vmatprep.subr.mxu0 0.0
    %1390 = vmatpush1.msra.mxu0 0.0
    %1391 = vmatprep.subr.mxu0 0.0
    %1392 = vmatpush1.msra.mxu0 0.0
    %1393 = vmatprep.subr.mxu0 0.0
    %1394 = vmatpush1.msra.mxu0 0.0
    %1395 = vmatprep.subr.mxu0 0.0
    %1396 = vmatpush1.msra.mxu0 0.0
    %1397 = vmatprep.subr.mxu0 0.0
    %1398 = vmatpush1.msra.mxu0 0.0
    %1399 = vmatprep.subr.mxu0 0.0
    %1400 = vmatpush1.msra.mxu0 0.0
    %1401 = vmatprep.subr.mxu0 0.0
    %1402 = vmatpush1.msra.mxu0 0.0
    %1403 = vmatprep.subr.mxu0 0.0
    %1404 = vmatpush1.msra.mxu0 0.0
    %1405 = vmatprep.subr.mxu0 0.0
    %1406 = vmatpush1.msra.mxu0 0.0
    %1407 = vmatprep.subr.mxu0 0.0
    %1408 = vmatpush1.msra.mxu0 0.0
    %1409 = vmatprep.subr.mxu0 0.0
    %1410 = vmatpush1.msra.mxu0 0.0
    %1411 = vmatprep.subr.mxu0 0.0
    %1412 = vmatpush1.msra.mxu0 0.0
    %1413 = vmatprep.subr.mxu0 0.0
    %1414 = vmatpush1.msra.mxu0 0.0
    %1415 = vmatprep.subr.mxu0 0.0
    %1416 = vmatpush1.msra.mxu0 0.0
    %1417 = vmatprep.subr.mxu0 0.0
    %1418 = vmatpush1.msra.mxu0 0.0
    %1419 = vmatprep.subr.mxu0 0.0
    %1420 = vmatpush1.msra.mxu0 0.0
    %1421 = vmatprep.subr.mxu0 0.0
    %1422 = vmatpush1.msra.mxu0 0.0
    %1423 = vmatprep.subr.mxu0 0.0
    %1424 = vmatpush1.msra.mxu0 0.0
    %1425 = vmatprep.subr.mxu0 0.0
    %1426 = vmatpush1.msra.mxu0 0.0
    %1427 = vmatprep.subr.mxu0 0.0
    %1428 = vmatpush1.msra.mxu0 0.0
    %1429 = vmatprep.subr.mxu0 0.0
    %1430 = vmatpush1.msra.mxu0 0.0
    %1431 = vmatprep.subr.mxu0 0.0
    %1432 = vmatpush1.msra.mxu0 0.0
    %1433 = vmatprep.mubr.f32.mxu0 0.0
    %1434 = vmatmul.mubr.f32.gmra.mrb[0].mxu0 %v1364
    %v1435 = vpop.f32.mrb[0].mxu0
    %v1436 = vadd.f32 0.0, %v1435
    %v1437 = vpop.f32.mrb[0].mxu0
    %1438 = vmatprep.mubr.f32.mxu0 0.0
    %1439 = vmatmul.mubr.f32.gmra.mrb[0].mxu0 %v1367
    %v1440 = vpop.f32.mrb[0].mxu0
    %v1441 = vadd.f32 0.0, %v1440
    %v1442 = vpop.f32.mrb[0].mxu0
    %1443 = vdwg.mxu0
    %v1444 = vadd.f32 %v1021, %v1436
    %v1445 = vadd.f32 %v1026, %v1441
    %1446 = vrot.lane.b32.xlu0 %v176, 104
    %v1447 = vpop.permute.xlu0 %1446
    %1448 = vrot.lane.b32.xlu0 %v176, 72
    %v1449 = vpop.permute.xlu0 %1448
    %v1450 = vsel %vm191, %v1447, 0
    %v1452 = vsel %vm191, %v1449, 0
    %1454 = vmatprep.subr.mxu0 0.0
    %1455 = vmatpush1.xpose.msra.mxu0 %v1452
    %1456 = vmatprep.subr.mxu0 0.0
    %1457 = vmatpush1.xpose.msra.mxu0 0.0
    %1458 = vmatprep.subr.mxu0 0.0
    %1459 = vmatpush1.xpose.msra.mxu0 0.0
    %1460 = vmatprep.subr.mxu0 0.0
    %1461 = vmatpush1.xpose.msra.mxu0 0.0
    %1462 = vmatprep.subr.mxu0 0.0
    %1463 = vmatpush1.xpose.msra.mxu0 0.0
    %1464 = vmatprep.subr.mxu0 0.0
    %1465 = vmatpush1.xpose.msra.mxu0 0.0
    %1466 = vmatprep.subr.mxu0 0.0
    %1467 = vmatpush1.xpose.msra.mxu0 0.0
    %1468 = vmatprep.subr.mxu0 0.0
    %1469 = vmatpush1.xpose.msra.mxu0 0.0
    %1470 = vmatprep.subr.mxu0 0.0
    %1471 = vmatpush1.xpose.msra.mxu0 0.0
    %1472 = vmatprep.subr.mxu0 0.0
    %1473 = vmatpush1.xpose.msra.mxu0 0.0
    %1474 = vmatprep.subr.mxu0 0.0
    %1475 = vmatpush1.xpose.msra.mxu0 0.0
    %1476 = vmatprep.subr.mxu0 0.0
    %1477 = vmatpush1.xpose.msra.mxu0 0.0
    %1478 = vmatprep.subr.mxu0 0.0
    %1479 = vmatpush1.xpose.msra.mxu0 0.0
    %1480 = vmatprep.subr.mxu0 0.0
    %1481 = vmatpush1.xpose.msra.mxu0 0.0
    %1482 = vmatprep.subr.mxu0 0.0
    %1483 = vmatpush1.xpose.msra.mxu0 0.0
    %1484 = vmatprep.subr.mxu0 0.0
    %1485 = vmatpush1.xpose.msra.mxu0 0.0
    %1486 = vmatprep.subr.mxu0 0.0
    %1487 = vmatpush1.xpose.msra.mxu0 0.0
    %1488 = vmatprep.subr.mxu0 0.0
    %1489 = vmatpush1.xpose.msra.mxu0 0.0
    %1490 = vmatprep.subr.mxu0 0.0
    %1491 = vmatpush1.xpose.msra.mxu0 0.0
    %1492 = vmatprep.subr.mxu0 0.0
    %1493 = vmatpush1.xpose.msra.mxu0 0.0
    %1494 = vmatprep.subr.mxu0 0.0
    %1495 = vmatpush1.xpose.msra.mxu0 0.0
    %1496 = vmatprep.subr.mxu0 0.0
    %1497 = vmatpush1.xpose.msra.mxu0 0.0
    %1498 = vmatprep.subr.mxu0 0.0
    %1499 = vmatpush1.xpose.msra.mxu0 0.0
    %1500 = vmatprep.subr.mxu0 0.0
    %1501 = vmatpush1.xpose.msra.mxu0 0.0
    %1502 = vmatprep.subr.mxu0 0.0
    %1503 = vmatpush1.xpose.msra.mxu0 0.0
    %1504 = vmatprep.subr.mxu0 0.0
    %1505 = vmatpush1.xpose.msra.mxu0 0.0
    %1506 = vmatprep.subr.mxu0 0.0
    %1507 = vmatpush1.xpose.msra.mxu0 0.0
    %1508 = vmatprep.subr.mxu0 0.0
    %1509 = vmatpush1.xpose.msra.mxu0 0.0
    %1510 = vmatprep.subr.mxu0 0.0
    %1511 = vmatpush1.xpose.msra.mxu0 0.0
    %1512 = vmatprep.subr.mxu0 0.0
    %1513 = vmatpush1.xpose.msra.mxu0 0.0
    %1514 = vmatprep.subr.mxu0 0.0
    %1515 = vmatpush1.xpose.msra.mxu0 0.0
    %1516 = vmatprep.subr.mxu0 0.0
    %1517 = vmatpush1.xpose.msra.mxu0 0.0
    %1518 = vmatprep.mubr.f32.mxu0 0.0
    %1519 = vmatmul.mubr.f32.gmra.mrb[0].mxu0 %v1450
    %v1520 = vpop.f32.mrb[0].mxu0
    %v1521 = vadd.f32 0.0, %v1520
    %v1522 = vpop.f32.mrb[0].mxu0
    %1523 = vdwg.mxu0
    %1524 = vrot.lane.b32.xlu0 %v181, 104
    %v1525 = vpop.permute.xlu0 %1524
    %1526 = vrot.lane.b32.xlu0 %v181, 72
    %v1527 = vpop.permute.xlu0 %1526
    %v1528 = vsel %vm191, %v1525, 0
    %v1530 = vsel %vm191, %v1527, 0
    %1532 = vmatprep.subr.mxu0 0.0
    %1533 = vmatpush1.xpose.msra.mxu0 %v1530
    %1534 = vmatprep.subr.mxu0 0.0
    %1535 = vmatpush1.xpose.msra.mxu0 0.0
    %1536 = vmatprep.subr.mxu0 0.0
    %1537 = vmatpush1.xpose.msra.mxu0 0.0
    %1538 = vmatprep.subr.mxu0 0.0
    %1539 = vmatpush1.xpose.msra.mxu0 0.0
    %1540 = vmatprep.subr.mxu0 0.0
    %1541 = vmatpush1.xpose.msra.mxu0 0.0
    %1542 = vmatprep.subr.mxu0 0.0
    %1543 = vmatpush1.xpose.msra.mxu0 0.0
    %1544 = vmatprep.subr.mxu0 0.0
    %1545 = vmatpush1.xpose.msra.mxu0 0.0
    %1546 = vmatprep.subr.mxu0 0.0
    %1547 = vmatpush1.xpose.msra.mxu0 0.0
    %1548 = vmatprep.subr.mxu0 0.0
    %1549 = vmatpush1.xpose.msra.mxu0 0.0
    %1550 = vmatprep.subr.mxu0 0.0
    %1551 = vmatpush1.xpose.msra.mxu0 0.0
    %1552 = vmatprep.subr.mxu0 0.0
    %1553 = vmatpush1.xpose.msra.mxu0 0.0
    %1554 = vmatprep.subr.mxu0 0.0
    %1555 = vmatpush1.xpose.msra.mxu0 0.0
    %1556 = vmatprep.subr.mxu0 0.0
    %1557 = vmatpush1.xpose.msra.mxu0 0.0
    %1558 = vmatprep.subr.mxu0 0.0
    %1559 = vmatpush1.xpose.msra.mxu0 0.0
    %1560 = vmatprep.subr.mxu0 0.0
    %1561 = vmatpush1.xpose.msra.mxu0 0.0
    %1562 = vmatprep.subr.mxu0 0.0
    %1563 = vmatpush1.xpose.msra.mxu0 0.0
    %1564 = vmatprep.subr.mxu0 0.0
    %1565 = vmatpush1.xpose.msra.mxu0 0.0
    %1566 = vmatprep.subr.mxu0 0.0
    %1567 = vmatpush1.xpose.msra.mxu0 0.0
    %1568 = vmatprep.subr.mxu0 0.0
    %1569 = vmatpush1.xpose.msra.mxu0 0.0
    %1570 = vmatprep.subr.mxu0 0.0
    %1571 = vmatpush1.xpose.msra.mxu0 0.0
    %1572 = vmatprep.subr.mxu0 0.0
    %1573 = vmatpush1.xpose.msra.mxu0 0.0
    %1574 = vmatprep.subr.mxu0 0.0
    %1575 = vmatpush1.xpose.msra.mxu0 0.0
    %1576 = vmatprep.subr.mxu0 0.0
    %1577 = vmatpush1.xpose.msra.mxu0 0.0
    %1578 = vmatprep.subr.mxu0 0.0
    %1579 = vmatpush1.xpose.msra.mxu0 0.0
    %1580 = vmatprep.subr.mxu0 0.0
    %1581 = vmatpush1.xpose.msra.mxu0 0.0
    %1582 = vmatprep.subr.mxu0 0.0
    %1583 = vmatpush1.xpose.msra.mxu0 0.0
    %1584 = vmatprep.subr.mxu0 0.0
    %1585 = vmatpush1.xpose.msra.mxu0 0.0
    %1586 = vmatprep.subr.mxu0 0.0
    %1587 = vmatpush1.xpose.msra.mxu0 0.0
    %1588 = vmatprep.subr.mxu0 0.0
    %1589 = vmatpush1.xpose.msra.mxu0 0.0
    %1590 = vmatprep.subr.mxu0 0.0
    %1591 = vmatpush1.xpose.msra.mxu0 0.0
    %1592 = vmatprep.subr.mxu0 0.0
    %1593 = vmatpush1.xpose.msra.mxu0 0.0
    %1594 = vmatprep.subr.mxu0 0.0
    %1595 = vmatpush1.xpose.msra.mxu0 0.0
    %1596 = vmatprep.mubr.f32.mxu0 0.0
    %1597 = vmatmul.mubr.f32.gmra.mrb[0].mxu0 %v1528
    %v1598 = vpop.f32.mrb[0].mxu0
    %v1599 = vadd.f32 0.0, %v1598
    %v1600 = vpop.f32.mrb[0].mxu0
    %1601 = vdwg.mxu0
    %v1602 = vmul.f32 %v1521, 0.35355338
    %v1603 = vmul.f32 %v1599, 0.35355338
    %v1604 = vsel %vm355, -1e+09, %v1602
    %v1605 = vsel %vm356, -1e+09, %v1603
    %v1606 = vsel %vm191, %v1604, -inf
    %1607 = vmax.xlane.f32.xlu0 %v1606
    %v1608 = vpop.xlane.xlu0 %1607
    %v1609 = vsel %vm191, %v1605, -inf
    %1610 = vmax.xlane.f32.xlu0 %v1609
    %v1611 = vpop.xlane.xlu0 %1610
    %v1612 = vsub.f32 %v1604, %v1608
    %v1613 = vsub.f32 %v1605, %v1611
    %v1614 = vmul.f32 %v1612, 1.442695
    %v1615 = vpow.pop %v1614
    %v1616 = vmul.f32 %v1613, 1.442695
    %v1617 = vpow.pop %v1616
    %v1618 = vsel %vm191, %v1615, 0.0
    %1619 = vadd.xlane.f32.xlu0 %v1618
    %v1620 = vpop.xlane.xlu0 %1619
    %v1621 = vsel %vm191, %v1617, 0.0
    %1622 = vadd.xlane.f32.xlu0 %v1621
    %v1623 = vpop.xlane.xlu0 %1622
    %v1624 = vrcp.pop %v1620
    %v1625 = vrcp.pop %v1623
    %v1626 = vmul.f32 %v1615, %v1624
    %v1627 = vmul.f32 %v1617, %v1625
    %1628 = vrot.lane.b32.xlu0 %v176, 40
    %v1629 = vpop.permute.xlu0 %1628
    %v1632 = vsel %vm191, %v1626, 0
    %1634 = vmatprep.subr.mxu0 0.0
    %1635 = vmatpush1.msra.mxu0 %v1629
    %1636 = vmatprep.subr.mxu0 0.0
    %1637 = vmatpush1.msra.mxu0 0.0
    %1638 = vmatprep.subr.mxu0 0.0
    %1639 = vmatpush1.msra.mxu0 0.0
    %1640 = vmatprep.subr.mxu0 0.0
    %1641 = vmatpush1.msra.mxu0 0.0
    %1642 = vmatprep.subr.mxu0 0.0
    %1643 = vmatpush1.msra.mxu0 0.0
    %1644 = vmatprep.subr.mxu0 0.0
    %1645 = vmatpush1.msra.mxu0 0.0
    %1646 = vmatprep.subr.mxu0 0.0
    %1647 = vmatpush1.msra.mxu0 0.0
    %1648 = vmatprep.subr.mxu0 0.0
    %1649 = vmatpush1.msra.mxu0 0.0
    %1650 = vmatprep.subr.mxu0 0.0
    %1651 = vmatpush1.msra.mxu0 0.0
    %1652 = vmatprep.subr.mxu0 0.0
    %1653 = vmatpush1.msra.mxu0 0.0
    %1654 = vmatprep.subr.mxu0 0.0
    %1655 = vmatpush1.msra.mxu0 0.0
    %1656 = vmatprep.subr.mxu0 0.0
    %1657 = vmatpush1.msra.mxu0 0.0
    %1658 = vmatprep.subr.mxu0 0.0
    %1659 = vmatpush1.msra.mxu0 0.0
    %1660 = vmatprep.subr.mxu0 0.0
    %1661 = vmatpush1.msra.mxu0 0.0
    %1662 = vmatprep.subr.mxu0 0.0
    %1663 = vmatpush1.msra.mxu0 0.0
    %1664 = vmatprep.subr.mxu0 0.0
    %1665 = vmatpush1.msra.mxu0 0.0
    %1666 = vmatprep.subr.mxu0 0.0
    %1667 = vmatpush1.msra.mxu0 0.0
    %1668 = vmatprep.subr.mxu0 0.0
    %1669 = vmatpush1.msra.mxu0 0.0
    %1670 = vmatprep.subr.mxu0 0.0
    %1671 = vmatpush1.msra.mxu0 0.0
    %1672 = vmatprep.subr.mxu0 0.0
    %1673 = vmatpush1.msra.mxu0 0.0
    %1674 = vmatprep.subr.mxu0 0.0
    %1675 = vmatpush1.msra.mxu0 0.0
    %1676 = vmatprep.subr.mxu0 0.0
    %1677 = vmatpush1.msra.mxu0 0.0
    %1678 = vmatprep.subr.mxu0 0.0
    %1679 = vmatpush1.msra.mxu0 0.0
    %1680 = vmatprep.subr.mxu0 0.0
    %1681 = vmatpush1.msra.mxu0 0.0
    %1682 = vmatprep.subr.mxu0 0.0
    %1683 = vmatpush1.msra.mxu0 0.0
    %1684 = vmatprep.subr.mxu0 0.0
    %1685 = vmatpush1.msra.mxu0 0.0
    %1686 = vmatprep.subr.mxu0 0.0
    %1687 = vmatpush1.msra.mxu0 0.0
    %1688 = vmatprep.subr.mxu0 0.0
    %1689 = vmatpush1.msra.mxu0 0.0
    %1690 = vmatprep.subr.mxu0 0.0
    %1691 = vmatpush1.msra.mxu0 0.0
    %1692 = vmatprep.subr.mxu0 0.0
    %1693 = vmatpush1.msra.mxu0 0.0
    %1694 = vmatprep.subr.mxu0 0.0
    %1695 = vmatpush1.msra.mxu0 0.0
    %1696 = vmatprep.subr.mxu0 0.0
    %1697 = vmatpush1.msra.mxu0 0.0
    %1698 = vmatprep.mubr.f32.mxu0 0.0
    %1699 = vmatmul.mubr.f32.gmra.mrb[0].mxu0 %v1632
    %v1700 = vpop.f32.mrb[0].mxu0
    %v1701 = vadd.f32 0.0, %v1700
    %v1702 = vpop.f32.mrb[0].mxu0
    %1703 = vdwg.mxu0
    %1704 = vrot.lane.b32.xlu0 %v181, 40
    %v1705 = vpop.permute.xlu0 %1704
    %v1708 = vsel %vm191, %v1627, 0
    %1710 = vmatprep.subr.mxu0 0.0
    %1711 = vmatpush1.msra.mxu0 %v1705
    %1712 = vmatprep.subr.mxu0 0.0
    %1713 = vmatpush1.msra.mxu0 0.0
    %1714 = vmatprep.subr.mxu0 0.0
    %1715 = vmatpush1.msra.mxu0 0.0
    %1716 = vmatprep.subr.mxu0 0.0
    %1717 = vmatpush1.msra.mxu0 0.0
    %1718 = vmatprep.subr.mxu0 0.0
    %1719 = vmatpush1.msra.mxu0 0.0
    %1720 = vmatprep.subr.mxu0 0.0
    %1721 = vmatpush1.msra.mxu0 0.0
    %1722 = vmatprep.subr.mxu0 0.0
    %1723 = vmatpush1.msra.mxu0 0.0
    %1724 = vmatprep.subr.mxu0 0.0
    %1725 = vmatpush1.msra.mxu0 0.0
    %1726 = vmatprep.subr.mxu0 0.0
    %1727 = vmatpush1.msra.mxu0 0.0
    %1728 = vmatprep.subr.mxu0 0.0
    %1729 = vmatpush1.msra.mxu0 0.0
    %1730 = vmatprep.subr.mxu0 0.0
    %1731 = vmatpush1.msra.mxu0 0.0
    %1732 = vmatprep.subr.mxu0 0.0
    %1733 = vmatpush1.msra.mxu0 0.0
    %1734 = vmatprep.subr.mxu0 0.0
    %1735 = vmatpush1.msra.mxu0 0.0
    %1736 = vmatprep.subr.mxu0 0.0
    %1737 = vmatpush1.msra.mxu0 0.0
    %1738 = vmatprep.subr.mxu0 0.0
    %1739 = vmatpush1.msra.mxu0 0.0
    %1740 = vmatprep.subr.mxu0 0.0
    %1741 = vmatpush1.msra.mxu0 0.0
    %1742 = vmatprep.subr.mxu0 0.0
    %1743 = vmatpush1.msra.mxu0 0.0
    %1744 = vmatprep.subr.mxu0 0.0
    %1745 = vmatpush1.msra.mxu0 0.0
    %1746 = vmatprep.subr.mxu0 0.0
    %1747 = vmatpush1.msra.mxu0 0.0
    %1748 = vmatprep.subr.mxu0 0.0
    %1749 = vmatpush1.msra.mxu0 0.0
    %1750 = vmatprep.subr.mxu0 0.0
    %1751 = vmatpush1.msra.mxu0 0.0
    %1752 = vmatprep.subr.mxu0 0.0
    %1753 = vmatpush1.msra.mxu0 0.0
    %1754 = vmatprep.subr.mxu0 0.0
    %1755 = vmatpush1.msra.mxu0 0.0
    %1756 = vmatprep.subr.mxu0 0.0
    %1757 = vmatpush1.msra.mxu0 0.0
    %1758 = vmatprep.subr.mxu0 0.0
    %1759 = vmatpush1.msra.mxu0 0.0
    %1760 = vmatprep.subr.mxu0 0.0
    %1761 = vmatpush1.msra.mxu0 0.0
    %1762 = vmatprep.subr.mxu0 0.0
    %1763 = vmatpush1.msra.mxu0 0.0
    %1764 = vmatprep.subr.mxu0 0.0
    %1765 = vmatpush1.msra.mxu0 0.0
    %1766 = vmatprep.subr.mxu0 0.0
    %1767 = vmatpush1.msra.mxu0 0.0
    %1768 = vmatprep.subr.mxu0 0.0
    %1769 = vmatpush1.msra.mxu0 0.0
    %1770 = vmatprep.subr.mxu0 0.0
    %1771 = vmatpush1.msra.mxu0 0.0
    %1772 = vmatprep.subr.mxu0 0.0
    %1773 = vmatpush1.msra.mxu0 0.0
    %1774 = vmatprep.mubr.f32.mxu0 0.0
    %1775 = vmatmul.mubr.f32.gmra.mrb[0].mxu0 %v1708
    %v1776 = vpop.f32.mrb[0].mxu0
    %v1777 = vadd.f32 0.0, %v1776
    %v1778 = vpop.f32.mrb[0].mxu0
    %1779 = vdwg.mxu0
    %v1781 = vsel %vm191, %v1701, 0
    %v1784 = vsel %vm191, %v1777, 0
    %1786 = vmatprep.subr.mxu0 0.0
    %1787 = vmatpush1.msra.mxu0 %v187
    %1788 = vmatprep.subr.mxu0 0.0
    %1789 = vmatpush1.msra.mxu0 0.0
    %1790 = vmatprep.subr.mxu0 0.0
    %1791 = vmatpush1.msra.mxu0 0.0
    %1792 = vmatprep.subr.mxu0 0.0
    %1793 = vmatpush1.msra.mxu0 0.0
    %1794 = vmatprep.subr.mxu0 0.0
    %1795 = vmatpush1.msra.mxu0 0.0
    %1796 = vmatprep.subr.mxu0 0.0
    %1797 = vmatpush1.msra.mxu0 0.0
    %1798 = vmatprep.subr.mxu0 0.0
    %1799 = vmatpush1.msra.mxu0 0.0
    %1800 = vmatprep.subr.mxu0 0.0
    %1801 = vmatpush1.msra.mxu0 0.0
    %1802 = vmatprep.subr.mxu0 0.0
    %1803 = vmatpush1.msra.mxu0 0.0
    %1804 = vmatprep.subr.mxu0 0.0
    %1805 = vmatpush1.msra.mxu0 0.0
    %1806 = vmatprep.subr.mxu0 0.0
    %1807 = vmatpush1.msra.mxu0 0.0
    %1808 = vmatprep.subr.mxu0 0.0
    %1809 = vmatpush1.msra.mxu0 0.0
    %1810 = vmatprep.subr.mxu0 0.0
    %1811 = vmatpush1.msra.mxu0 0.0
    %1812 = vmatprep.subr.mxu0 0.0
    %1813 = vmatpush1.msra.mxu0 0.0
    %1814 = vmatprep.subr.mxu0 0.0
    %1815 = vmatpush1.msra.mxu0 0.0
    %1816 = vmatprep.subr.mxu0 0.0
    %1817 = vmatpush1.msra.mxu0 0.0
    %1818 = vmatprep.subr.mxu0 0.0
    %1819 = vmatpush1.msra.mxu0 0.0
    %1820 = vmatprep.subr.mxu0 0.0
    %1821 = vmatpush1.msra.mxu0 0.0
    %1822 = vmatprep.subr.mxu0 0.0
    %1823 = vmatpush1.msra.mxu0 0.0
    %1824 = vmatprep.subr.mxu0 0.0
    %1825 = vmatpush1.msra.mxu0 0.0
    %1826 = vmatprep.subr.mxu0 0.0
    %1827 = vmatpush1.msra.mxu0 0.0
    %1828 = vmatprep.subr.mxu0 0.0
    %1829 = vmatpush1.msra.mxu0 0.0
    %1830 = vmatprep.subr.mxu0 0.0
    %1831 = vmatpush1.msra.mxu0 0.0
    %1832 = vmatprep.subr.mxu0 0.0
    %1833 = vmatpush1.msra.mxu0 0.0
    %1834 = vmatprep.subr.mxu0 0.0
    %1835 = vmatpush1.msra.mxu0 0.0
    %1836 = vmatprep.subr.mxu0 0.0
    %1837 = vmatpush1.msra.mxu0 0.0
    %1838 = vmatprep.subr.mxu0 0.0
    %1839 = vmatpush1.msra.mxu0 0.0
    %1840 = vmatprep.subr.mxu0 0.0
    %1841 = vmatpush1.msra.mxu0 0.0
    %1842 = vmatprep.subr.mxu0 0.0
    %1843 = vmatpush1.msra.mxu0 0.0
    %1844 = vmatprep.subr.mxu0 0.0
    %1845 = vmatpush1.msra.mxu0 0.0
    %1846 = vmatprep.subr.mxu0 0.0
    %1847 = vmatpush1.msra.mxu0 0.0
    %1848 = vmatprep.subr.mxu0 0.0
    %1849 = vmatpush1.msra.mxu0 0.0
    %1850 = vmatprep.mubr.f32.mxu0 0.0
    %1851 = vmatmul.mubr.f32.gmra.mrb[0].mxu0 %v1781
    %v1852 = vpop.f32.mrb[0].mxu0
    %v1853 = vadd.f32 0.0, %v1852
    %v1854 = vpop.f32.mrb[0].mxu0
    %1855 = vmatprep.mubr.f32.mxu0 0.0
    %1856 = vmatmul.mubr.f32.gmra.mrb[0].mxu0 %v1784
    %v1857 = vpop.f32.mrb[0].mxu0
    %v1858 = vadd.f32 0.0, %v1857
    %v1859 = vpop.f32.mrb[0].mxu0
    %1860 = vdwg.mxu0
    %v1861 = vadd.f32 %v1444, %v1853
    %v1862 = vadd.f32 %v1445, %v1858
    %v1863 = vld [vmem:[%s5] sm:$0x1]
    %v1865 = vlaneseq
    %v1866 = vshrl.u32 %v1865, 7
    %v1867 = vsub.s32 0, %v1866
    %v1868 = vrot.slane %v1863, %v1867
    %v1870 = vadd.f32 %v1861, %v1868
    %v1871 = vadd.f32 %v1862, %v1868
    %v1872 = vadd.f32 %v62, %v1870
    %v1873 = vadd.f32 %v63, %v1871
    %v1874 = vsel %vm102, %v1872, 0.0
    %1875 = vadd.xlane.f32.xlu0 %v1874
    %v1876 = vpop.xlane.xlu0 %1875
    %v1877 = vsel %vm102, %v1873, 0.0
    %1878 = vadd.xlane.f32.xlu0 %v1877
    %v1879 = vpop.xlane.xlu0 %1878
    %v1880 = vrcp.pop 32.0
    %v1881 = vmul.f32 %v1876, %v1880
    %v1882 = vmul.f32 %v1879, %v1880
    %v1883 = vsub.f32 %v1872, %v1881
    %v1884 = vsub.f32 %v1873, %v1882
    %v1885 = vmul.f32 %v1883, %v1883
    %v1886 = vmul.f32 %v1884, %v1884
    %v1887 = vsel %vm102, %v1885, 0.0
    %1888 = vadd.xlane.f32.xlu0 %v1887
    %v1889 = vpop.xlane.xlu0 %1888
    %v1890 = vsel %vm102, %v1886, 0.0
    %1891 = vadd.xlane.f32.xlu0 %v1890
    %v1892 = vpop.xlane.xlu0 %1891
    %v1893 = vrcp.pop 31.0
    %v1894 = vmul.f32 %v1889, %v1893
    %v1895 = vmul.f32 %v1892, %v1893
    %v1896 = vrsqrt.pop %v1894
    %v1897 = vmul.f32 %v1894, %v1896
    %vm1898 = vcmp.eq.f32.partialorder %v1894, inf
    %v1899 = vsel %vm1898, %v1894, %v1897
    %vm1900 = vcmp.eq.f32.partialorder %v1894, 0.0
    %v1901 = vand.u32 %v1894, 2147483648
    %v1902 = vsel %vm1900, %v1901, %v1899
    %v1903 = vrsqrt.pop %v1895
    %v1904 = vmul.f32 %v1895, %v1903
    %vm1905 = vcmp.eq.f32.partialorder %v1895, inf
    %v1906 = vsel %vm1905, %v1895, %v1904
    %vm1907 = vcmp.eq.f32.partialorder %v1895, 0.0
    %v1908 = vand.u32 %v1895, 2147483648
    %v1909 = vsel %vm1907, %v1908, %v1906
    %v1910 = vld [vmem:[%s10] sm:$0x1]
    %v1912 = vlaneseq
    %v1913 = vshrl.u32 %v1912, 7
    %v1914 = vsub.s32 0, %v1913
    %v1915 = vrot.slane %v1910, %v1914
    %v1917 = vmul.f32 %v1915, %v1883
    %v1918 = vmul.f32 %v1915, %v1884
    %v1919 = vadd.f32 %v1902, 1e-06
    %v1920 = vadd.f32 %v1909, 1e-06
    %v1921 = vrcp.pop %v1919
    %v1922 = vmul.f32 %v1917, %v1921
    %v1923 = vrcp.pop %v1920
    %v1924 = vmul.f32 %v1918, %v1923
    %v1925 = vld [vmem:[%s11] sm:$0x1]
    %v1927 = vlaneseq
    %v1928 = vshrl.u32 %v1927, 7
    %v1929 = vsub.s32 0, %v1928
    %v1930 = vrot.slane %v1925, %v1929
    %v1932 = vadd.f32 %v1922, %v1930
    %v1933 = vadd.f32 %v1924, %v1930
    %v1934 = vld [vmem:[%s6] sm:$0xff]
    %v1935 = vld [vmem:[%s6 + $0x8] sm:$0xff]
    %v1936 = vld [vmem:[%s6 + $0x10] sm:$0xff]
    %v1937 = vld [vmem:[%s6 + $0x18] sm:$0xff]
    %v1938 = vld [vmem:[%s7] sm:$0x1]
    %v1940 = vlaneseq
    %v1941 = vshrl.u32 %v1940, 7
    %v1942 = vsub.s32 0, %v1941
    %v1943 = vrot.slane %v1938, %v1942
    %v1946 = vsel %vm102, %v1932, 0
    %v1949 = vsel %vm102, %v1933, 0
    %1951 = vmatprep.subr.mxu0 0.0
    %1952 = vmatpush1.msra.mxu0 %v1934
    %1953 = vmatprep.subr.mxu0 0.0
    %1954 = vmatpush1.msra.mxu0 %v1935
    %1955 = vmatprep.subr.mxu0 0.0
    %1956 = vmatpush1.msra.mxu0 %v1936
    %1957 = vmatprep.subr.mxu0 0.0
    %1958 = vmatpush1.msra.mxu0 %v1937
    %1959 = vmatprep.subr.mxu0 0.0
    %1960 = vmatpush1.msra.mxu0 0.0
    %1961 = vmatprep.subr.mxu0 0.0
    %1962 = vmatpush1.msra.mxu0 0.0
    %1963 = vmatprep.subr.mxu0 0.0
    %1964 = vmatpush1.msra.mxu0 0.0
    %1965 = vmatprep.subr.mxu0 0.0
    %1966 = vmatpush1.msra.mxu0 0.0
    %1967 = vmatprep.subr.mxu0 0.0
    %1968 = vmatpush1.msra.mxu0 0.0
    %1969 = vmatprep.subr.mxu0 0.0
    %1970 = vmatpush1.msra.mxu0 0.0
    %1971 = vmatprep.subr.mxu0 0.0
    %1972 = vmatpush1.msra.mxu0 0.0
    %1973 = vmatprep.subr.mxu0 0.0
    %1974 = vmatpush1.msra.mxu0 0.0
    %1975 = vmatprep.subr.mxu0 0.0
    %1976 = vmatpush1.msra.mxu0 0.0
    %1977 = vmatprep.subr.mxu0 0.0
    %1978 = vmatpush1.msra.mxu0 0.0
    %1979 = vmatprep.subr.mxu0 0.0
    %1980 = vmatpush1.msra.mxu0 0.0
    %1981 = vmatprep.subr.mxu0 0.0
    %1982 = vmatpush1.msra.mxu0 0.0
    %1983 = vmatprep.subr.mxu0 0.0
    %1984 = vmatpush1.msra.mxu0 0.0
    %1985 = vmatprep.subr.mxu0 0.0
    %1986 = vmatpush1.msra.mxu0 0.0
    %1987 = vmatprep.subr.mxu0 0.0
    %1988 = vmatpush1.msra.mxu0 0.0
    %1989 = vmatprep.subr.mxu0 0.0
    %1990 = vmatpush1.msra.mxu0 0.0
    %1991 = vmatprep.subr.mxu0 0.0
    %1992 = vmatpush1.msra.mxu0 0.0
    %1993 = vmatprep.subr.mxu0 0.0
    %1994 = vmatpush1.msra.mxu0 0.0
    %1995 = vmatprep.subr.mxu0 0.0
    %1996 = vmatpush1.msra.mxu0 0.0
    %1997 = vmatprep.subr.mxu0 0.0
    %1998 = vmatpush1.msra.mxu0 0.0
    %1999 = vmatprep.subr.mxu0 0.0
    %2000 = vmatpush1.msra.mxu0 0.0
    %2001 = vmatprep.subr.mxu0 0.0
    %2002 = vmatpush1.msra.mxu0 0.0
    %2003 = vmatprep.subr.mxu0 0.0
    %2004 = vmatpush1.msra.mxu0 0.0
    %2005 = vmatprep.subr.mxu0 0.0
    %2006 = vmatpush1.msra.mxu0 0.0
    %2007 = vmatprep.subr.mxu0 0.0
    %2008 = vmatpush1.msra.mxu0 0.0
    %2009 = vmatprep.subr.mxu0 0.0
    %2010 = vmatpush1.msra.mxu0 0.0
    %2011 = vmatprep.subr.mxu0 0.0
    %2012 = vmatpush1.msra.mxu0 0.0
    %2013 = vmatprep.subr.mxu0 0.0
    %2014 = vmatpush1.msra.mxu0 0.0
    %2015 = vmatprep.mubr.f32.mxu0 0.0
    %2016 = vmatmul.mubr.f32.gmra.mrb[0].mxu0 %v1946
    %v2017 = vpop.f32.mrb[0].mxu0
    %v2018 = vadd.f32 %v1943, %v2017
    %v2019 = vpop.f32.mrb[0].mxu0
    %2020 = vmatprep.mubr.f32.mxu0 0.0
    %2021 = vmatmul.mubr.f32.gmra.mrb[0].mxu0 %v1949
    %v2022 = vpop.f32.mrb[0].mxu0
    %v2023 = vadd.f32 %v1943, %v2022
    %v2024 = vpop.f32.mrb[0].mxu0
    %2025 = vdwg.mxu0
    %v2026 = vmax.f32 %v2018, 0.0
    %v2027 = vmax.f32 %v2023, 0.0
    %v2028 = vld [vmem:[%s8] sm:$0xff]
    %v2029 = vld [vmem:[%s8 + $0x8] sm:$0xff]
    %v2030 = vld [vmem:[%s8 + $0x10] sm:$0xff]
    %v2031 = vld [vmem:[%s8 + $0x18] sm:$0xff]
    %v2032 = vld [vmem:[%s8 + $0x20] sm:$0xff]
    %v2033 = vld [vmem:[%s8 + $0x28] sm:$0xff]
    %v2034 = vld [vmem:[%s8 + $0x30] sm:$0xff]
    %v2035 = vld [vmem:[%s8 + $0x38] sm:$0xff]
    %v2036 = vld [vmem:[%s9] sm:$0x1]
    %v2038 = vlaneseq
    %v2039 = vshrl.u32 %v2038, 7
    %v2040 = vsub.s32 0, %v2039
    %v2041 = vrot.slane %v2036, %v2040
    %vm2043 = vcmask 523264
    %v2045 = vsel %vm2043, %v2026, 0
    %v2048 = vsel %vm2043, %v2027, 0
    %2050 = vmatprep.subr.mxu0 0.0
    %2051 = vmatpush1.msra.mxu0 %v2028
    %2052 = vmatprep.subr.mxu0 0.0
    %2053 = vmatpush1.msra.mxu0 %v2029
    %2054 = vmatprep.subr.mxu0 0.0
    %2055 = vmatpush1.msra.mxu0 %v2030
    %2056 = vmatprep.subr.mxu0 0.0
    %2057 = vmatpush1.msra.mxu0 %v2031
    %2058 = vmatprep.subr.mxu0 0.0
    %2059 = vmatpush1.msra.mxu0 %v2032
    %2060 = vmatprep.subr.mxu0 0.0
    %2061 = vmatpush1.msra.mxu0 %v2033
    %2062 = vmatprep.subr.mxu0 0.0
    %2063 = vmatpush1.msra.mxu0 %v2034
    %2064 = vmatprep.subr.mxu0 0.0
    %2065 = vmatpush1.msra.mxu0 %v2035
    %2066 = vmatprep.subr.mxu0 0.0
    %2067 = vmatpush1.msra.mxu0 0.0
    %2068 = vmatprep.subr.mxu0 0.0
    %2069 = vmatpush1.msra.mxu0 0.0
    %2070 = vmatprep.subr.mxu0 0.0
    %2071 = vmatpush1.msra.mxu0 0.0
    %2072 = vmatprep.subr.mxu0 0.0
    %2073 = vmatpush1.msra.mxu0 0.0
    %2074 = vmatprep.subr.mxu0 0.0
    %2075 = vmatpush1.msra.mxu0 0.0
    %2076 = vmatprep.subr.mxu0 0.0
    %2077 = vmatpush1.msra.mxu0 0.0
    %2078 = vmatprep.subr.mxu0 0.0
    %2079 = vmatpush1.msra.mxu0 0.0
    %2080 = vmatprep.subr.mxu0 0.0
    %2081 = vmatpush1.msra.mxu0 0.0
    %2082 = vmatprep.subr.mxu0 0.0
    %2083 = vmatpush1.msra.mxu0 0.0
    %2084 = vmatprep.subr.mxu0 0.0
    %2085 = vmatpush1.msra.mxu0 0.0
    %2086 = vmatprep.subr.mxu0 0.0
    %2087 = vmatpush1.msra.mxu0 0.0
    %2088 = vmatprep.subr.mxu0 0.0
    %2089 = vmatpush1.msra.mxu0 0.0
    %2090 = vmatprep.subr.mxu0 0.0
    %2091 = vmatpush1.msra.mxu0 0.0
    %2092 = vmatprep.subr.mxu0 0.0
    %2093 = vmatpush1.msra.mxu0 0.0
    %2094 = vmatprep.subr.mxu0 0.0
    %2095 = vmatpush1.msra.mxu0 0.0
    %2096 = vmatprep.subr.mxu0 0.0
    %2097 = vmatpush1.msra.mxu0 0.0
    %2098 = vmatprep.subr.mxu0 0.0
    %2099 = vmatpush1.msra.mxu0 0.0
    %2100 = vmatprep.subr.mxu0 0.0
    %2101 = vmatpush1.msra.mxu0 0.0
    %2102 = vmatprep.subr.mxu0 0.0
    %2103 = vmatpush1.msra.mxu0 0.0
    %2104 = vmatprep.subr.mxu0 0.0
    %2105 = vmatpush1.msra.mxu0 0.0
    %2106 = vmatprep.subr.mxu0 0.0
    %2107 = vmatpush1.msra.mxu0 0.0
    %2108 = vmatprep.subr.mxu0 0.0
    %2109 = vmatpush1.msra.mxu0 0.0
    %2110 = vmatprep.subr.mxu0 0.0
    %2111 = vmatpush1.msra.mxu0 0.0
    %2112 = vmatprep.subr.mxu0 0.0
    %2113 = vmatpush1.msra.mxu0 0.0
    %2114 = vmatprep.mubr.f32.mxu0 0.0
    %2115 = vmatmul.mubr.f32.gmra.mrb[0].mxu0 %v2045
    %v2116 = vpop.f32.mrb[0].mxu0
    %v2117 = vadd.f32 %v2041, %v2116
    %v2118 = vpop.f32.mrb[0].mxu0
    %2119 = vmatprep.mubr.f32.mxu0 0.0
    %2120 = vmatmul.mubr.f32.gmra.mrb[0].mxu0 %v2048
    %v2121 = vpop.f32.mrb[0].mxu0
    %v2122 = vadd.f32 %v2041, %v2121
    %v2123 = vpop.f32.mrb[0].mxu0
    %2124 = vdwg.mxu0
    %v2125 = vadd.f32 %v1932, %v2117
    %v2126 = vadd.f32 %v1933, %v2122
    %v2127 = vsel %vm102, %v2125, 0.0
    %2128 = vadd.xlane.f32.xlu0 %v2127
    %v2129 = vpop.xlane.xlu0 %2128
    %v2130 = vsel %vm102, %v2126, 0.0
    %2131 = vadd.xlane.f32.xlu0 %v2130
    %v2132 = vpop.xlane.xlu0 %2131
    %v2133 = vmul.f32 %v2129, %v1880
    %v2134 = vmul.f32 %v2132, %v1880
    %v2135 = vsub.f32 %v2125, %v2133
    %v2136 = vsub.f32 %v2126, %v2134
    %v2137 = vmul.f32 %v2135, %v2135
    %v2138 = vmul.f32 %v2136, %v2136
    %v2139 = vsel %vm102, %v2137, 0.0
    %2140 = vadd.xlane.f32.xlu0 %v2139
    %v2141 = vpop.xlane.xlu0 %2140
    %v2142 = vsel %vm102, %v2138, 0.0
    %2143 = vadd.xlane.f32.xlu0 %v2142
    %v2144 = vpop.xlane.xlu0 %2143
    %v2145 = vmul.f32 %v2141, %v1893
    %v2146 = vmul.f32 %v2144, %v1893
    %v2147 = vrsqrt.pop %v2145
    %v2148 = vmul.f32 %v2145, %v2147
    %vm2149 = vcmp.eq.f32.partialorder %v2145, inf
    %v2150 = vsel %vm2149, %v2145, %v2148
    %vm2151 = vcmp.eq.f32.partialorder %v2145, 0.0
    %v2152 = vand.u32 %v2145, 2147483648
    %v2153 = vsel %vm2151, %v2152, %v2150
    %v2154 = vrsqrt.pop %v2146
    %v2155 = vmul.f32 %v2146, %v2154
    %vm2156 = vcmp.eq.f32.partialorder %v2146, inf
    %v2157 = vsel %vm2156, %v2146, %v2155
    %vm2158 = vcmp.eq.f32.partialorder %v2146, 0.0
    %v2159 = vand.u32 %v2146, 2147483648
    %v2160 = vsel %vm2158, %v2159, %v2157
    %v2161 = vld [vmem:[%s12] sm:$0x1]
    %v2163 = vlaneseq
    %v2164 = vshrl.u32 %v2163, 7
    %v2165 = vsub.s32 0, %v2164
    %v2166 = vrot.slane %v2161, %v2165
    %v2168 = vmul.f32 %v2166, %v2135
    %v2169 = vmul.f32 %v2166, %v2136
    %v2170 = vadd.f32 %v2153, 1e-06
    %v2171 = vadd.f32 %v2160, 1e-06
    %v2172 = vrcp.pop %v2170
    %v2173 = vmul.f32 %v2168, %v2172
    %v2174 = vrcp.pop %v2171
    %v2175 = vmul.f32 %v2169, %v2174
    %v2176 = vld [vmem:[%s13] sm:$0x1]
    %v2178 = vlaneseq
    %v2179 = vshrl.u32 %v2178, 7
    %v2180 = vsub.s32 0, %v2179
    %v2181 = vrot.slane %v2176, %v2180
    %v2183 = vadd.f32 %v2173, %v2181
    %v2184 = vadd.f32 %v2175, %v2181
    %v2186 = vrot.slane %v2183, 1
    %2187 = vrot.lane.b32.xlu0 %v2186, 32
    %v2188 = vpop.permute.xlu0 %2187
    %v2190 = vrot.slane %v2183, 2
    %2191 = vrot.lane.b32.xlu0 %v2190, 64
    %v2192 = vpop.permute.xlu0 %2191
    %v2194 = vrot.slane %v2183, 3
    %2195 = vrot.lane.b32.xlu0 %v2194, 96
    %v2196 = vpop.permute.xlu0 %2195
    %v2198 = vrot.slane %v2183, 4
    %v2200 = vrot.slane %v2183, 5
    %2201 = vrot.lane.b32.xlu0 %v2200, 32
    %v2202 = vpop.permute.xlu0 %2201
    %v2204 = vrot.slane %v2183, 6
    %2205 = vrot.lane.b32.xlu0 %v2204, 64
    %v2206 = vpop.permute.xlu0 %2205
    %v2208 = vrot.slane %v2183, 7
    %2209 = vrot.lane.b32.xlu0 %v2208, 96
    %v2210 = vpop.permute.xlu0 %2209
    %v2212 = vsel %vm102, %v2183, %v2188
    %v2213 = vsel %vm2043, %v2212, %v2192
    %vm2214 = vcmask 785408
    %v2215 = vsel %vm2214, %v2213, %v2196
    %v2216 = vsel %vm102, %v2198, %v2202
    %v2217 = vsel %vm2043, %v2216, %v2206
    %v2218 = vsel %vm2214, %v2217, %v2210
    %v2220 = vrot.slane %v2184, 1
    %2221 = vrot.lane.b32.xlu0 %v2220, 32
    %v2222 = vpop.permute.xlu0 %2221
    %v2224 = vrot.slane %v2184, 2
    %2225 = vrot.lane.b32.xlu0 %v2224, 64
    %v2226 = vpop.permute.xlu0 %2225
    %v2228 = vrot.slane %v2184, 3
    %2229 = vrot.lane.b32.xlu0 %v2228, 96
    %v2230 = vpop.permute.xlu0 %2229
    %v2232 = vrot.slane %v2184, 4
    %v2234 = vrot.slane %v2184, 5
    %2235 = vrot.lane.b32.xlu0 %v2234, 32
    %v2236 = vpop.permute.xlu0 %2235
    %v2238 = vrot.slane %v2184, 6
    %2239 = vrot.lane.b32.xlu0 %v2238, 64
    %v2240 = vpop.permute.xlu0 %2239
    %v2242 = vrot.slane %v2184, 7
    %2243 = vrot.lane.b32.xlu0 %v2242, 96
    %v2244 = vpop.permute.xlu0 %2243
    %v2246 = vsel %vm102, %v2184, %v2222
    %v2247 = vsel %vm2043, %v2246, %v2226
    %v2248 = vsel %vm2214, %v2247, %v2230
    %v2249 = vsel %vm102, %v2232, %v2236
    %v2250 = vsel %vm2043, %v2249, %v2240
    %v2251 = vsel %vm2214, %v2250, %v2244
    %v2254 = vrot.slane %v2248, 7
    %v2255 = vrot.slane %v2251, 7
    %vm2258 = vcmask 1040384
    %v2259 = vsel %vm2258, %v2215, %v2254
    %v2260 = vsel %vm2258, %v2218, %v2255
    %v2263 = vcombine.low %v2259, %v2260
    %v2265 = vunpack.c.l.s4 1983009808
    %v2266 = vunpack.c.0.s8 %v2265
    %v2267 = vlaneseq
    %v2268 = vshrl.u32 %v2267, 7
    %v2269 = vsub.s32 %v2266, %v2268
    %v2270 = vrot.slane %v2263, %v2269
    %2272 = vst [vmem:[#allocation5] sm:$0xf] %v2270
    // Predicated region
    $region62: #{tpu_custom_call.1} parent=1 // pred_check
      _
    $region63: #{tpu_custom_call.1} parent=1 // pred_check_branch
      %2274 = sbr.rel (0) target = $region65
    $region64: #{tpu_custom_call.1} parent=1 // pred_region
      %s2276 = ssub.s32 64, 64
      %2277 = vsyncadd [#allocation4], %s2276
      %s2279 = sshll.u32 [#allocation5], 4
      %s2280 = int_to_ptr.vmem [resolvable:$true] %s2279
      %2282 = dma.vmem_to_hbm [thread:$0]  %s2280, 64, %s14, [#allocation4]
    $region65: #{tpu_custom_call.1} parent=1 // pred_fallthru
      _
    // Predicated region
    $region66: #{tpu_custom_call.1} parent=1 // pred_check
      _
    $region67: #{tpu_custom_call.1} parent=1 // pred_check_branch
      %2284 = sbr.rel (0) target = $region69
    $region68: #{tpu_custom_call.1} parent=1 // pred_region
      %2285 = dma.done [#allocation4], 64
    $region69: #{tpu_custom_call.1} parent=1 // pred_fallthru
      _
    %2286 = vsyncpa [#allocation3], 1
    %2287 = vsyncpa [#allocation4], 1

</llo_original>
